<compile_context>
chip_gen: v6e
topology: v6e:2x2x1
jax: 0.10.0
libtpu: 0.0.40
codegen_flags: <defaults>
</compile_context>

<pallas_src>
import jax
import jax.numpy as jnp
from jax.experimental import pallas as pl
from jax.experimental.pallas import tpu as pltpu

_BN_EPS = 1e-5


# --------------------------------- kernels ----------------------------------

def _sage_layer_kernel(a_ref, hf_ref, hb_ref, w_ref, b_ref, o_ref):
    """One SAGEConv(mean) + folded-BN + ReLU on a row-block of nodes.

    out_rows = relu( (A_rows @ H) @ Wl + H_rows @ Wr + b )
    with [Wl; Wr] stacked into w_ref ([2C, Cout] bf16) and BN folded in.
    """
    c = hf_ref.shape[1]
    # N x N aggregation: bf16 x bf16 -> f32 accumulation on the MXU.
    agg = jnp.dot(a_ref[...], hf_ref[...], preferred_element_type=jnp.float32)
    # Combine: two dots against static sublane slices of the stacked weight
    # (no lane-axis concatenate of activations).
    out = jnp.dot(agg.astype(jnp.bfloat16), w_ref[:c, :],
                  preferred_element_type=jnp.float32)
    out = out + jnp.dot(hb_ref[...], w_ref[c:, :],
                        preferred_element_type=jnp.float32)
    out = out + b_ref[...]
    # TODO(synk): F.dropout is identity here (module evaluated in eval mode).
    o_ref[...] = jnp.maximum(out, 0.0).astype(o_ref.dtype)


def _make_tail_kernel(num_lin):
    """Last SAGE layer fused with the MLP head + log_softmax (row-local)."""

    def kernel(a_ref, hf_ref, hb_ref, sw_ref, sb_ref, *rest):
        o_ref = rest[-1]
        lin_refs = rest[:-1]

        c = hf_ref.shape[1]
        agg = jnp.dot(a_ref[...], hf_ref[...],
                      preferred_element_type=jnp.float32)
        h = jnp.dot(agg.astype(jnp.bfloat16), sw_ref[:c, :],
                    preferred_element_type=jnp.float32)
        h = h + jnp.dot(hb_ref[...], sw_ref[c:, :],
                        preferred_element_type=jnp.float32)
        h = h + sb_ref[...]
        h = jnp.maximum(h, 0.0).astype(jnp.bfloat16)

        # MLP head: (Linear + folded BN + ReLU) x (num_lin-1), then Linear.
        for li in range(num_lin):
            w_ref, b_ref = lin_refs[2 * li], lin_refs[2 * li + 1]
            z = jnp.dot(h, w_ref[...], preferred_element_type=jnp.float32)
            z = z + b_ref[...]
            if li < num_lin - 1:
                h = jnp.maximum(z, 0.0).astype(jnp.bfloat16)
            else:
                h = z                                    # keep f32 for softmax

        # log_softmax over the tiny class axis; broadcast subtract, no concat.
        m = jnp.max(h, axis=-1, keepdims=True)
        lse = m + jnp.log(jnp.sum(jnp.exp(h - m), axis=-1, keepdims=True))
        o_ref[...] = (h - lse).astype(o_ref.dtype)

    return kernel


# ------------------------------ pallas_call glue -----------------------------

def _row_grid_call(kernel, n, tm, a_norm, h, weights, out_dtype, n_out,
                   flops, transcendentals):
    """Row-parallel pallas_call: A row-blocked, H/weights resident, out blocked."""
    c = h.shape[1]
    grid = (pl.cdiv(n, tm),)

    in_specs = [
        pl.BlockSpec((tm, n), lambda i: (i, 0)),        # A row-block (streamed)
        pl.BlockSpec((n, c), lambda i: (0, 0)),         # full H (resident)
        pl.BlockSpec((tm, c), lambda i: (i, 0)),        # H row-block (root term)
    ]
    for w in weights:
        in_specs.append(pl.BlockSpec(w.shape, lambda i: (0, 0)))

    out_spec = pl.BlockSpec((tm, n_out), lambda i: (i, 0))

    w_bytes = sum(int(t.size) * t.dtype.itemsize for t in weights)
    out_itemsize = jnp.dtype(out_dtype).itemsize
    bytes_accessed = (n * n * a_norm.dtype.itemsize
                      + 2 * int(h.size) * h.dtype.itemsize
                      + w_bytes
                      + n * n_out * out_itemsize)

    # Explicit VMEM budget: double-buffered A/H row blocks + resident H +
    # weights + output block, with headroom; capped at v7x's 64 MiB physical.
    vmem_needed = 2 * (tm * n * 2 + n * c * 2 + tm * c * 2 + w_bytes
                       + tm * n_out * out_itemsize)
    vmem_limit = int(min(max(vmem_needed + (4 << 20), 16 << 20), 64 << 20))

    return pl.pallas_call(
        kernel,
        grid=grid,
        out_shape=jax.ShapeDtypeStruct((n, n_out), out_dtype),
        in_specs=in_specs,
        out_specs=out_spec,
        compiler_params=pltpu.CompilerParams(
            dimension_semantics=("parallel",),
            vmem_limit_bytes=vmem_limit),
        cost_estimate=pl.CostEstimate(flops=flops,
                                      transcendentals=transcendentals,
                                      bytes_accessed=bytes_accessed),
    )(a_norm, h, h, *weights)


@jax.jit
def gcn_forward(x, a_norm_bf16, params):
    sage, lin = params["sage"], params["lin"]
    n = x.shape[0]
    tm = n if n <= 256 else 256        # row block (v7x: halve if VMEM-bound)
    h = x.astype(jnp.bfloat16)

    # Hidden SAGE layers (all but the last): one row-parallel call each.
    for p in sage[:-1]:
        c, cout = h.shape[1], p["w"].shape[1]
        flops = 2 * n * n * c + 2 * n * (2 * c) * cout
        h = _row_grid_call(_sage_layer_kernel, n, tm, a_norm_bf16, h,
                           [p["w"], p["b"]], jnp.bfloat16, cout, flops, 0)

    # Last SAGE layer fused with the MLP head + log_softmax.
    p_last = sage[-1]
    c, cout = h.shape[1], p_last["w"].shape[1]
    flops = 2 * n * n * c + 2 * n * (2 * c) * cout
    ci = cout
    lin_flat = []
    for p in lin:
        lin_flat += [p["w"], p["b"]]
        co = p["w"].shape[1]
        flops += 2 * n * ci * co
        ci = co
    n_classes = lin[-1]["w"].shape[1]
    tail_kernel = _make_tail_kernel(len(lin))
    out = _row_grid_call(tail_kernel, n, tm, a_norm_bf16, h,
                         [p_last["w"], p_last["b"]] + lin_flat,
                         jnp.float32, n_classes, flops, 3 * n)
    return out


# ------------------------------ parameter setup ------------------------------

def _bn_scale_shift(dim):
    # PyTorch BatchNorm1d defaults: gamma=1, beta=0, running_mean=0, var=1.
    # TODO(synk): with trained running stats, refold using those values.
    gamma = jnp.ones((dim,), jnp.float32)
    beta = jnp.zeros((dim,), jnp.float32)
    mean = jnp.zeros((dim,), jnp.float32)
    var = jnp.ones((dim,), jnp.float32)
    scale = gamma / jnp.sqrt(var + _BN_EPS)
    shift = beta - mean * scale
    return scale, shift


def init_params(key, in_channels, hidden_channels, num_layers):
    """Random weights with BatchNorm folded in on the host; weights in bf16."""
    params = {"sage": [], "lin": []}

    # convs2[:-1]: (num_layers - 1) SAGEConv layers used by the forward pass.
    sage_dims = [(in_channels, hidden_channels)] + \
                [(hidden_channels, hidden_channels)] * (num_layers - 2)
    for (cin, cout) in sage_dims:
        key, k1, k2, k3 = jax.random.split(key, 4)
        std = 1.0 / jnp.sqrt(cin)
        wl = jax.random.normal(k1, (cin, cout), jnp.float32) * std
        wr = jax.random.normal(k2, (cin, cout), jnp.float32) * std
        b = jax.random.normal(k3, (cout,), jnp.float32) * std
        scale, shift = _bn_scale_shift(cout)
        # Fold BN into the stacked weight / bias:
        #   BN(agg@Wl + x@Wr + b) = agg@(Wl*s) + x@(Wr*s) + (b*s + shift)
        w_cat = (jnp.concatenate([wl, wr], axis=0) * scale[None, :])
        b_f = (b * scale + shift).reshape(1, cout)
        params["sage"].append(dict(w=w_cat.astype(jnp.bfloat16),
                                   b=b_f.astype(jnp.float32)))

    # linear head: hidden->hidden, hidden->64, 64->14 (each + BN + relu), 14->2
    lin_dims = [(hidden_channels, hidden_channels),
                (hidden_channels, 64), (64, 14), (14, 2)]
    num_bn = 3
    for li, (cin, cout) in enumerate(lin_dims):
        key, k1, k2 = jax.random.split(key, 3)
        std = 1.0 / jnp.sqrt(cin)
        w = jax.random.normal(k1, (cin, cout), jnp.float32) * std
        b = jax.random.normal(k2, (cout,), jnp.float32) * std
        if li < num_bn:
            scale, shift = _bn_scale_shift(cout)
            w = w * scale[None, :]
            b = b * scale + shift
        params["lin"].append(dict(w=w.astype(jnp.bfloat16),
                                  b=b.reshape(1, cout).astype(jnp.float32)))
    return params


# ------------------------------ pure-JAX reference ---------------------------

def gcn_reference(x_bf16, a_norm_bf16, params):
    h = x_bf16.astype(jnp.float32)
    a = a_norm_bf16.astype(jnp.float32)
    for p in params["sage"]:
        c = h.shape[1]
        w = p["w"].astype(jnp.float32)
        agg = a @ h
        h = jnp.maximum(agg @ w[:c] + h @ w[c:] + p["b"], 0.0)
    nlin = len(params["lin"])
    for li, p in enumerate(params["lin"]):
        h = h @ p["w"].astype(jnp.float32) + p["b"]
        if li < nlin - 1:
            h = jnp.maximum(h, 0.0)
    return jax.nn.log_softmax(h, axis=-1)


# ----------------------------------- main ------------------------------------

if __name__ == "__main__":
    N = 128            # number of graph nodes
    IN_CHANNELS = 16
    HIDDEN = 32
    NUM_LAYERS = 3

    key = jax.random.PRNGKey(0)
    key, kx, ka = jax.random.split(key, 3)

    x = jax.random.normal(kx, (N, IN_CHANNELS), jnp.float32)

    # Dense "similarity_matrix": non-negative, row-normalized -> mean
    # aggregation.  Precomputed once on the host and fed to the kernels in
    # bf16 (the N x N aggregation matmul accumulates in f32 on the MXU).
    sim = jax.nn.softplus(jax.random.normal(ka, (N, N), jnp.float32))
    a_norm = (sim / jnp.sum(sim, axis=-1, keepdims=True)).astype(jnp.bfloat16)

    params = init_params(key, IN_CHANNELS, HIDDEN, NUM_LAYERS)

    out = jax.block_until_ready(gcn_forward(x, a_norm, params))

    assert out.shape == (N, 2), out.shape
    # log_softmax rows must (approximately) exp-sum to 1
    assert jnp.allclose(jnp.sum(jnp.exp(out), axis=-1), 1.0, atol=1e-3)
    # cross-check against a pure-JAX f32 reference (bf16 rounding tolerance)
    ref = gcn_reference(x.astype(jnp.bfloat16), a_norm, params)
    assert jnp.allclose(out, ref, atol=1e-1), float(jnp.max(jnp.abs(out - ref)))
    print("KERNEL_OK")
</pallas_src>

<mosaic_0001>
module attributes {stable_mosaic.version = 11 : i64} {
  func.func @_sage_layer_kernel(%arg0: i32, %arg1: memref<128x128xbf16, #tpu.memory_space<vmem>>, %arg2: memref<128x16xbf16, #tpu.memory_space<vmem>>, %arg3: memref<128x16xbf16, #tpu.memory_space<vmem>>, %arg4: memref<32x32xbf16, #tpu.memory_space<vmem>>, %arg5: memref<1x32xf32, #tpu.memory_space<vmem>>, %arg6: memref<128x32xbf16, #tpu.memory_space<vmem>>) attributes {dimension_semantics = [#tpu.dimension_semantics<parallel>], iteration_bounds = array<i64: 1>, scalar_prefetch = 0 : i64, scratch_operands = 0 : i64, tpu.core_type = #tpu.core_type<tc>, window_params = [{transform_indices = @transform_0, window_bounds = array<i64: 128, 128>}, {pipeline_mode = #tpu.pipeline_mode<synchronous>, transform_indices = @transform_1, window_bounds = array<i64: 128, 16>}, {transform_indices = @transform_2, window_bounds = array<i64: 128, 16>}, {pipeline_mode = #tpu.pipeline_mode<synchronous>, transform_indices = @transform_3, window_bounds = array<i64: 32, 32>}, {pipeline_mode = #tpu.pipeline_mode<synchronous>, transform_indices = @transform_4, window_bounds = array<i64: 1, 32>}, {transform_indices = @transform_5, window_bounds = array<i64: 128, 32>}]} {
    %c0 = arith.constant 0 : index
    %c0_0 = arith.constant 0 : index
    %0 = vector.load %arg1[%c0, %c0_0] : memref<128x128xbf16, #tpu.memory_space<vmem>>, vector<128x128xbf16>
    %c0_1 = arith.constant 0 : index
    %c0_2 = arith.constant 0 : index
    %1 = vector.load %arg2[%c0_1, %c0_2] : memref<128x16xbf16, #tpu.memory_space<vmem>>, vector<128x16xbf16>
    %cst = arith.constant dense<0.000000e+00> : vector<128x16xf32>
    %2 = tpu.matmul %0, %1, %cst {dimension_numbers = #tpu.dot_dimension_numbers<[1], [0], [0], [1], [0, 0, 1, 1], [], []>} : vector<128x128xbf16>, vector<128x16xbf16>, vector<128x16xf32> -> vector<128x16xf32>
    %3 = arith.truncf %2 : vector<128x16xf32> to vector<128x16xbf16>
    %c0_3 = arith.constant 0 : index
    %c0_4 = arith.constant 0 : index
    %4 = vector.load %arg4[%c0_3, %c0_4] : memref<32x32xbf16, #tpu.memory_space<vmem>>, vector<16x32xbf16>
    %cst_5 = arith.constant dense<0.000000e+00> : vector<128x32xf32>
    %5 = tpu.matmul %3, %4, %cst_5 {dimension_numbers = #tpu.dot_dimension_numbers<[1], [0], [0], [1], [0, 0, 1, 1], [], []>} : vector<128x16xbf16>, vector<16x32xbf16>, vector<128x32xf32> -> vector<128x32xf32>
    %c0_6 = arith.constant 0 : index
    %c0_7 = arith.constant 0 : index
    %6 = vector.load %arg3[%c0_6, %c0_7] : memref<128x16xbf16, #tpu.memory_space<vmem>>, vector<128x16xbf16>
    %c16 = arith.constant 16 : index
    %c0_8 = arith.constant 0 : index
    %7 = vector.load %arg4[%c16, %c0_8] : memref<32x32xbf16, #tpu.memory_space<vmem>>, vector<16x32xbf16>
    %cst_9 = arith.constant dense<0.000000e+00> : vector<128x32xf32>
    %8 = tpu.matmul %6, %7, %cst_9 {dimension_numbers = #tpu.dot_dimension_numbers<[1], [0], [0], [1], [0, 0, 1, 1], [], []>} : vector<128x16xbf16>, vector<16x32xbf16>, vector<128x32xf32> -> vector<128x32xf32>
    %9 = arith.addf %5, %8 : vector<128x32xf32>
    %c0_10 = arith.constant 0 : index
    %c0_11 = arith.constant 0 : index
    %10 = vector.load %arg5[%c0_10, %c0_11] : memref<1x32xf32, #tpu.memory_space<vmem>>, vector<1x32xf32>
    %11 = vector.broadcast %10 : vector<1x32xf32> to vector<128x32xf32>
    %12 = arith.addf %9, %11 : vector<128x32xf32>
    %cst_12 = arith.constant 0.000000e+00 : f32
    %13 = vector.broadcast %cst_12 : f32 to vector<128x32xf32>
    %14 = arith.maximumf %12, %13 : vector<128x32xf32>
    %15 = arith.truncf %14 : vector<128x32xf32> to vector<128x32xbf16>
    %c0_13 = arith.constant 0 : index
    %c0_14 = arith.constant 0 : index
    %16 = vector.load %arg6[%c0_13, %c0_14] : memref<128x32xbf16, #tpu.memory_space<vmem>>, vector<128x32xbf16>
    tpu.vector_store %arg6[%c0_13, %c0_14], %15 {strides = array<i32>} : memref<128x32xbf16, #tpu.memory_space<vmem>>, vector<128x32xbf16>,
    return
  }
  func.func @transform_0(%arg0: i32) -> (i32, i32) {
    %c0_i32 = arith.constant 0 : i32
    %c0_i32_0 = arith.constant 0 : i32
    return %arg0, %c0_i32 : i32, i32
  }
  func.func @transform_1(%arg0: i32) -> (i32, i32) {
    %c0_i32 = arith.constant 0 : i32
    %c0_i32_0 = arith.constant 0 : i32
    %c0_i32_1 = arith.constant 0 : i32
    return %c0_i32, %c0_i32_0 : i32, i32
  }
  func.func @transform_2(%arg0: i32) -> (i32, i32) {
    %c0_i32 = arith.constant 0 : i32
    %c0_i32_0 = arith.constant 0 : i32
    return %arg0, %c0_i32 : i32, i32
  }
  func.func @transform_3(%arg0: i32) -> (i32, i32) {
    %c0_i32 = arith.constant 0 : i32
    %c0_i32_0 = arith.constant 0 : i32
    %c0_i32_1 = arith.constant 0 : i32
    return %c0_i32, %c0_i32_0 : i32, i32
  }
  func.func @transform_4(%arg0: i32) -> (i32, i32) {
    %c0_i32 = arith.constant 0 : i32
    %c0_i32_0 = arith.constant 0 : i32
    %c0_i32_1 = arith.constant 0 : i32
    return %c0_i32, %c0_i32_0 : i32, i32
  }
  func.func @transform_5(%arg0: i32) -> (i32, i32) {
    %c0_i32 = arith.constant 0 : i32
    %c0_i32_0 = arith.constant 0 : i32
    return %arg0, %c0_i32 : i32, i32
  }
}

module attributes {stable_mosaic.version = 11 : i64} {
  func.func @kernel(%arg0: i32, %arg1: memref<128x128xbf16, #tpu.memory_space<vmem>>, %arg2: memref<128x32xbf16, #tpu.memory_space<vmem>>, %arg3: memref<128x32xbf16, #tpu.memory_space<vmem>>, %arg4: memref<64x32xbf16, #tpu.memory_space<vmem>>, %arg5: memref<1x32xf32, #tpu.memory_space<vmem>>, %arg6: memref<32x32xbf16, #tpu.memory_space<vmem>>, %arg7: memref<1x32xf32, #tpu.memory_space<vmem>>, %arg8: memref<32x64xbf16, #tpu.memory_space<vmem>>, %arg9: memref<1x64xf32, #tpu.memory_space<vmem>>, %arg10: memref<64x14xbf16, #tpu.memory_space<vmem>>, %arg11: memref<1x14xf32, #tpu.memory_space<vmem>>, %arg12: memref<14x2xbf16, #tpu.memory_space<vmem>>, %arg13: memref<1x2xf32, #tpu.memory_space<vmem>>, %arg14: memref<128x2xf32, #tpu.memory_space<vmem>>) attributes {dimension_semantics = [#tpu.dimension_semantics<parallel>], iteration_bounds = array<i64: 1>, scalar_prefetch = 0 : i64, scratch_operands = 0 : i64, tpu.core_type = #tpu.core_type<tc>, window_params = [{transform_indices = @transform_0, window_bounds = array<i64: 128, 128>}, {pipeline_mode = #tpu.pipeline_mode<synchronous>, transform_indices = @transform_1, window_bounds = array<i64: 128, 32>}, {transform_indices = @transform_2, window_bounds = array<i64: 128, 32>}, {pipeline_mode = #tpu.pipeline_mode<synchronous>, transform_indices = @transform_3, window_bounds = array<i64: 64, 32>}, {pipeline_mode = #tpu.pipeline_mode<synchronous>, transform_indices = @transform_4, window_bounds = array<i64: 1, 32>}, {pipeline_mode = #tpu.pipeline_mode<synchronous>, transform_indices = @transform_5, window_bounds = array<i64: 32, 32>}, {pipeline_mode = #tpu.pipeline_mode<synchronous>, transform_indices = @transform_6, window_bounds = array<i64: 1, 32>}, {pipeline_mode = #tpu.pipeline_mode<synchronous>, transform_indices = @transform_7, window_bounds = array<i64: 32, 64>}, {pipeline_mode = #tpu.pipeline_mode<synchronous>, transform_indices = @transform_8, window_bounds = array<i64: 1, 64>}, {pipeline_mode = #tpu.pipeline_mode<synchronous>, transform_indices = @transform_9, window_bounds = array<i64: 64, 14>}, {pipeline_mode = #tpu.pipeline_mode<synchronous>, transform_indices = @transform_10, window_bounds = array<i64: 1, 14>}, {pipeline_mode = #tpu.pipeline_mode<synchronous>, transform_indices = @transform_11, window_bounds = array<i64: 14, 2>}, {pipeline_mode = #tpu.pipeline_mode<synchronous>, transform_indices = @transform_12, window_bounds = array<i64: 1, 2>}, {transform_indices = @transform_13, window_bounds = array<i64: 128, 2>}]} {
    %c0 = arith.constant 0 : index
    %c0_0 = arith.constant 0 : index
    %0 = vector.load %arg1[%c0, %c0_0] : memref<128x128xbf16, #tpu.memory_space<vmem>>, vector<128x128xbf16>
    %c0_1 = arith.constant 0 : index
    %c0_2 = arith.constant 0 : index
    %1 = vector.load %arg2[%c0_1, %c0_2] : memref<128x32xbf16, #tpu.memory_space<vmem>>, vector<128x32xbf16>
    %cst = arith.constant dense<0.000000e+00> : vector<128x32xf32>
    %2 = tpu.matmul %0, %1, %cst {dimension_numbers = #tpu.dot_dimension_numbers<[1], [0], [0], [1], [0, 0, 1, 1], [], []>} : vector<128x128xbf16>, vector<128x32xbf16>, vector<128x32xf32> -> vector<128x32xf32>
    %3 = arith.truncf %2 : vector<128x32xf32> to vector<128x32xbf16>
    %c0_3 = arith.constant 0 : index
    %c0_4 = arith.constant 0 : index
    %4 = vector.load %arg4[%c0_3, %c0_4] : memref<64x32xbf16, #tpu.memory_space<vmem>>, vector<32x32xbf16>
    %cst_5 = arith.constant dense<0.000000e+00> : vector<128x32xf32>
    %5 = tpu.matmul %3, %4, %cst_5 {dimension_numbers = #tpu.dot_dimension_numbers<[1], [0], [0], [1], [0, 0, 1, 1], [], []>} : vector<128x32xbf16>, vector<32x32xbf16>, vector<128x32xf32> -> vector<128x32xf32>
    %c0_6 = arith.constant 0 : index
    %c0_7 = arith.constant 0 : index
    %6 = vector.load %arg3[%c0_6, %c0_7] : memref<128x32xbf16, #tpu.memory_space<vmem>>, vector<128x32xbf16>
    %c32 = arith.constant 32 : index
    %c0_8 = arith.constant 0 : index
    %7 = vector.load %arg4[%c32, %c0_8] : memref<64x32xbf16, #tpu.memory_space<vmem>>, vector<32x32xbf16>
    %cst_9 = arith.constant dense<0.000000e+00> : vector<128x32xf32>
    %8 = tpu.matmul %6, %7, %cst_9 {dimension_numbers = #tpu.dot_dimension_numbers<[1], [0], [0], [1], [0, 0, 1, 1], [], []>} : vector<128x32xbf16>, vector<32x32xbf16>, vector<128x32xf32> -> vector<128x32xf32>
    %9 = arith.addf %5, %8 : vector<128x32xf32>
    %c0_10 = arith.constant 0 : index
    %c0_11 = arith.constant 0 : index
    %10 = vector.load %arg5[%c0_10, %c0_11] : memref<1x32xf32, #tpu.memory_space<vmem>>, vector<1x32xf32>
    %11 = vector.broadcast %10 : vector<1x32xf32> to vector<128x32xf32>
    %12 = arith.addf %9, %11 : vector<128x32xf32>
    %cst_12 = arith.constant 0.000000e+00 : f32
    %13 = vector.broadcast %cst_12 : f32 to vector<128x32xf32>
    %14 = arith.maximumf %12, %13 : vector<128x32xf32>
    %15 = arith.truncf %14 : vector<128x32xf32> to vector<128x32xbf16>
    %c0_13 = arith.constant 0 : index
    %c0_14 = arith.constant 0 : index
    %16 = vector.load %arg6[%c0_13, %c0_14] : memref<32x32xbf16, #tpu.memory_space<vmem>>, vector<32x32xbf16>
    %cst_15 = arith.constant dense<0.000000e+00> : vector<128x32xf32>
    %17 = tpu.matmul %15, %16, %cst_15 {dimension_numbers = #tpu.dot_dimension_numbers<[1], [0], [0], [1], [0, 0, 1, 1], [], []>} : vector<128x32xbf16>, vector<32x32xbf16>, vector<128x32xf32> -> vector<128x32xf32>
    %c0_16 = arith.constant 0 : index
    %c0_17 = arith.constant 0 : index
    %18 = vector.load %arg7[%c0_16, %c0_17] : memref<1x32xf32, #tpu.memory_space<vmem>>, vector<1x32xf32>
    %19 = vector.broadcast %18 : vector<1x32xf32> to vector<128x32xf32>
    %20 = arith.addf %17, %19 : vector<128x32xf32>
    %cst_18 = arith.constant 0.000000e+00 : f32
    %21 = vector.broadcast %cst_18 : f32 to vector<128x32xf32>
    %22 = arith.maximumf %20, %21 : vector<128x32xf32>
    %23 = arith.truncf %22 : vector<128x32xf32> to vector<128x32xbf16>
    %c0_19 = arith.constant 0 : index
    %c0_20 = arith.constant 0 : index
    %24 = vector.load %arg8[%c0_19, %c0_20] : memref<32x64xbf16, #tpu.memory_space<vmem>>, vector<32x64xbf16>
    %cst_21 = arith.constant dense<0.000000e+00> : vector<128x64xf32>
    %25 = tpu.matmul %23, %24, %cst_21 {dimension_numbers = #tpu.dot_dimension_numbers<[1], [0], [0], [1], [0, 0, 1, 1], [], []>} : vector<128x32xbf16>, vector<32x64xbf16>, vector<128x64xf32> -> vector<128x64xf32>
    %c0_22 = arith.constant 0 : index
    %c0_23 = arith.constant 0 : index
    %26 = vector.load %arg9[%c0_22, %c0_23] : memref<1x64xf32, #tpu.memory_space<vmem>>, vector<1x64xf32>
    %27 = vector.broadcast %26 : vector<1x64xf32> to vector<128x64xf32>
    %28 = arith.addf %25, %27 : vector<128x64xf32>
    %cst_24 = arith.constant 0.000000e+00 : f32
    %29 = vector.broadcast %cst_24 : f32 to vector<128x64xf32>
    %30 = arith.maximumf %28, %29 : vector<128x64xf32>
    %31 = arith.truncf %30 : vector<128x64xf32> to vector<128x64xbf16>
    %c0_25 = arith.constant 0 : index
    %c0_26 = arith.constant 0 : index
    %32 = vector.load %arg10[%c0_25, %c0_26] : memref<64x14xbf16, #tpu.memory_space<vmem>>, vector<64x14xbf16>
    %cst_27 = arith.constant dense<0.000000e+00> : vector<128x14xf32>
    %33 = tpu.matmul %31, %32, %cst_27 {dimension_numbers = #tpu.dot_dimension_numbers<[1], [0], [0], [1], [0, 0, 1, 1], [], []>} : vector<128x64xbf16>, vector<64x14xbf16>, vector<128x14xf32> -> vector<128x14xf32>
    %c0_28 = arith.constant 0 : index
    %c0_29 = arith.constant 0 : index
    %34 = vector.load %arg11[%c0_28, %c0_29] : memref<1x14xf32, #tpu.memory_space<vmem>>, vector<1x14xf32>
    %35 = vector.broadcast %34 : vector<1x14xf32> to vector<128x14xf32>
    %36 = arith.addf %33, %35 : vector<128x14xf32>
    %cst_30 = arith.constant 0.000000e+00 : f32
    %37 = vector.broadcast %cst_30 : f32 to vector<128x14xf32>
    %38 = arith.maximumf %36, %37 : vector<128x14xf32>
    %39 = arith.truncf %38 : vector<128x14xf32> to vector<128x14xbf16>
    %c0_31 = arith.constant 0 : index
    %c0_32 = arith.constant 0 : index
    %40 = vector.load %arg12[%c0_31, %c0_32] : memref<14x2xbf16, #tpu.memory_space<vmem>>, vector<14x2xbf16>
    %cst_33 = arith.constant dense<0.000000e+00> : vector<128x2xf32>
    %41 = tpu.matmul %39, %40, %cst_33 {dimension_numbers = #tpu.dot_dimension_numbers<[1], [0], [0], [1], [0, 0, 1, 1], [], []>} : vector<128x14xbf16>, vector<14x2xbf16>, vector<128x2xf32> -> vector<128x2xf32>
    %c0_34 = arith.constant 0 : index
    %c0_35 = arith.constant 0 : index
    %42 = vector.load %arg13[%c0_34, %c0_35] : memref<1x2xf32, #tpu.memory_space<vmem>>, vector<1x2xf32>
    %43 = vector.broadcast %42 : vector<1x2xf32> to vector<128x2xf32>
    %44 = arith.addf %41, %43 : vector<128x2xf32>
    %cst_36 = arith.constant dense<0xFF800000> : vector<128xf32>
    %45 = vector.multi_reduction <maximumf>, %44, %cst_36 [1] : vector<128x2xf32> to vector<128xf32>
    %46 = vector.shape_cast %45 : vector<128xf32> to vector<128x1xf32>
    %47 = vector.broadcast %46 : vector<128x1xf32> to vector<128x2xf32>
    %48 = arith.subf %44, %47 : vector<128x2xf32>
    %49 = math.exp %48 : vector<128x2xf32>
    %cst_37 = arith.constant dense<0.000000e+00> : vector<128xf32>
    %50 = vector.multi_reduction <add>, %49, %cst_37 [1] : vector<128x2xf32> to vector<128xf32>
    %51 = vector.shape_cast %50 : vector<128xf32> to vector<128x1xf32>
    %52 = math.log %51 : vector<128x1xf32>
    %53 = arith.addf %46, %52 : vector<128x1xf32>
    %54 = vector.broadcast %53 : vector<128x1xf32> to vector<128x2xf32>
    %55 = arith.subf %44, %54 : vector<128x2xf32>
    %c0_38 = arith.constant 0 : index
    %c0_39 = arith.constant 0 : index
    %56 = vector.load %arg14[%c0_38, %c0_39] : memref<128x2xf32, #tpu.memory_space<vmem>>, vector<128x2xf32>
    tpu.vector_store %arg14[%c0_38, %c0_39], %55 {strides = array<i32>} : memref<128x2xf32, #tpu.memory_space<vmem>>, vector<128x2xf32>,
    return
  }
  func.func @transform_0(%arg0: i32) -> (i32, i32) {
    %c0_i32 = arith.constant 0 : i32
    %c0_i32_0 = arith.constant 0 : i32
    return %arg0, %c0_i32 : i32, i32
  }
  func.func @transform_1(%arg0: i32) -> (i32, i32) {
    %c0_i32 = arith.constant 0 : i32
    %c0_i32_0 = arith.constant 0 : i32
    %c0_i32_1 = arith.constant 0 : i32
    return %c0_i32, %c0_i32_0 : i32, i32
  }
  func.func @transform_2(%arg0: i32) -> (i32, i32) {
    %c0_i32 = arith.constant 0 : i32
    %c0_i32_0 = arith.constant 0 : i32
    return %arg0, %c0_i32 : i32, i32
  }
  func.func @transform_3(%arg0: i32) -> (i32, i32) {
    %c0_i32 = arith.constant 0 : i32
    %c0_i32_0 = arith.constant 0 : i32
    %c0_i32_1 = arith.constant 0 : i32
    return %c0_i32, %c0_i32_0 : i32, i32
  }
  func.func @transform_4(%arg0: i32) -> (i32, i32) {
    %c0_i32 = arith.constant 0 : i32
    %c0_i32_0 = arith.constant 0 : i32
    %c0_i32_1 = arith.constant 0 : i32
    return %c0_i32, %c0_i32_0 : i32, i32
  }
  func.func @transform_5(%arg0: i32) -> (i32, i32) {
    %c0_i32 = arith.constant 0 : i32
    %c0_i32_0 = arith.constant 0 : i32
    %c0_i32_1 = arith.constant 0 : i32
    return %c0_i32, %c0_i32_0 : i32, i32
  }
  func.func @transform_6(%arg0: i32) -> (i32, i32) {
    %c0_i32 = arith.constant 0 : i32
    %c0_i32_0 = arith.constant 0 : i32
    %c0_i32_1 = arith.constant 0 : i32
    return %c0_i32, %c0_i32_0 : i32, i32
  }
  func.func @transform_7(%arg0: i32) -> (i32, i32) {
    %c0_i32 = arith.constant 0 : i32
    %c0_i32_0 = arith.constant 0 : i32
    %c0_i32_1 = arith.constant 0 : i32
    return %c0_i32, %c0_i32_0 : i32, i32
  }
  func.func @transform_8(%arg0: i32) -> (i32, i32) {
    %c0_i32 = arith.constant 0 : i32
    %c0_i32_0 = arith.constant 0 : i32
    %c0_i32_1 = arith.constant 0 : i32
    return %c0_i32, %c0_i32_0 : i32, i32
  }
  func.func @transform_9(%arg0: i32) -> (i32, i32) {
    %c0_i32 = arith.constant 0 : i32
    %c0_i32_0 = arith.constant 0 : i32
    %c0_i32_1 = arith.constant 0 : i32
    return %c0_i32, %c0_i32_0 : i32, i32
  }
  func.func @transform_10(%arg0: i32) -> (i32, i32) {
    %c0_i32 = arith.constant 0 : i32
    %c0_i32_0 = arith.constant 0 : i32
    %c0_i32_1 = arith.constant 0 : i32
    return %c0_i32, %c0_i32_0 : i32, i32
  }
  func.func @transform_11(%arg0: i32) -> (i32, i32) {
    %c0_i32 = arith.constant 0 : i32
    %c0_i32_0 = arith.constant 0 : i32
    %c0_i32_1 = arith.constant 0 : i32
    return %c0_i32, %c0_i32_0 : i32, i32
  }
  func.func @transform_12(%arg0: i32) -> (i32, i32) {
    %c0_i32 = arith.constant 0 : i32
    %c0_i32_0 = arith.constant 0 : i32
    %c0_i32_1 = arith.constant 0 : i32
    return %c0_i32, %c0_i32_0 : i32, i32
  }
  func.func @transform_13(%arg0: i32) -> (i32, i32) {
    %c0_i32 = arith.constant 0 : i32
    %c0_i32_0 = arith.constant 0 : i32
    return %arg0, %c0_i32 : i32, i32
  }
}

</mosaic_0001>

<llo_original>
// kernel: gcn_forward.2
$region0: #{gcn_forward.2}
  #allocation0 [shape = 'u32[]', space=smem, size = 0x4, offset = 0x4, fixed_abs, tag = 'smem constant byte address 0x4 - core index']
  #allocation1 [shape = 'u32[144,128]{1,0:T(1,128)}', space=vmem, size = 0x12000, scoped, tag = 'internal scratch']
  %s0 = inlined_call_operand.vmem [shape: bf16[128,128], index: 0, kind: input, shape index: {}]
  %s1 = inlined_call_operand.vmem [shape: bf16[128,16], index: 1, kind: input, shape index: {}, may-alias: {1,2}]
  %s2 = inlined_call_operand.vmem [shape: bf16[128,16], index: 2, kind: input, shape index: {}, may-alias: {1,2}]
  %s3 = inlined_call_operand.vmem [shape: bf16[32,32], index: 3, kind: input, shape index: {}]
  %s4 = inlined_call_operand.vmem [shape: f32[1,32], index: 4, kind: input, shape index: {}]
  %s5 = inlined_call_operand.vmem [shape: bf16[128,32], index: 5, kind: output, shape index: {}]
  %s6 = sld [smem:[#allocation0]]
  $region30: #{gcn_forward.2} parent=0
    _
  %s8 = ssub.s32 1, %s6
  %s9 = scalar_select 0, %s8, %s6
  // Predicated region
  $region2: #{gcn_forward.2} parent=0 // pred_check
    _
  $region3: #{gcn_forward.2} parent=0 // pred_check_branch
    %11 = sbr.rel (0) target = $region5
  $region4: #{gcn_forward.2} parent=0 // pred_region
    _
  $region5: #{gcn_forward.2} parent=0 // pred_fallthru
    _
  // Predicated region
  $region6: #{gcn_forward.2} parent=0 // pred_check
    _
  $region7: #{gcn_forward.2} parent=0 // pred_check_branch
    %13 = sbr.rel (0) target = $region9
  $region8: #{gcn_forward.2} parent=0 // pred_region
    _
  $region9: #{gcn_forward.2} parent=0 // pred_fallthru
    _
  // Predicated region
  $region10: #{gcn_forward.2} parent=0 // pred_check
    _
  $region11: #{gcn_forward.2} parent=0 // pred_check_branch
    %15 = sbr.rel (0) target = $region13
  $region12: #{gcn_forward.2} parent=0 // pred_region
    _
  $region13: #{gcn_forward.2} parent=0 // pred_fallthru
    _
  // Predicated region
  $region14: #{gcn_forward.2} parent=0 // pred_check
    _
  $region15: #{gcn_forward.2} parent=0 // pred_check_branch
    %17 = sbr.rel (0) target = $region17
  $region16: #{gcn_forward.2} parent=0 // pred_region
    _
  $region17: #{gcn_forward.2} parent=0 // pred_fallthru
    _
  // Predicated region
  $region18: #{gcn_forward.2} parent=0 // pred_check
    _
  $region19: #{gcn_forward.2} parent=0 // pred_check_branch
    %19 = sbr.rel (0) target = $region21
  $region20: #{gcn_forward.2} parent=0 // pred_region
    _
  $region21: #{gcn_forward.2} parent=0 // pred_fallthru
    _
  %v21 = vld [vmem:[%s0] sm:$0xf]
  %v22 = vld [vmem:[%s0 + $0x4] sm:$0xf]
  %v23 = vld [vmem:[%s0 + $0x8] sm:$0xf]
  %v24 = vld [vmem:[%s0 + $0xc] sm:$0xf]
  %v25 = vld [vmem:[%s0 + $0x10] sm:$0xf]
  %v26 = vld [vmem:[%s0 + $0x14] sm:$0xf]
  %v27 = vld [vmem:[%s0 + $0x18] sm:$0xf]
  %v28 = vld [vmem:[%s0 + $0x1c] sm:$0xf]
  %v29 = vld [vmem:[%s0 + $0x20] sm:$0xf]
  %v30 = vld [vmem:[%s0 + $0x24] sm:$0xf]
  %v31 = vld [vmem:[%s0 + $0x28] sm:$0xf]
  %v32 = vld [vmem:[%s0 + $0x2c] sm:$0xf]
  %v33 = vld [vmem:[%s0 + $0x30] sm:$0xf]
  %v34 = vld [vmem:[%s0 + $0x34] sm:$0xf]
  %v35 = vld [vmem:[%s0 + $0x38] sm:$0xf]
  %v36 = vld [vmem:[%s0 + $0x3c] sm:$0xf]
  %v37 = vld [vmem:[%s1] sm:$0xf]
  %v38 = vld [vmem:[%s1 + $0x4] sm:$0xf]
  %v39 = vld [vmem:[%s1 + $0x8] sm:$0xf]
  %v40 = vld [vmem:[%s1 + $0xc] sm:$0xf]
  %v41 = vld [vmem:[%s1 + $0x10] sm:$0xf]
  %v42 = vld [vmem:[%s1 + $0x14] sm:$0xf]
  %v43 = vld [vmem:[%s1 + $0x18] sm:$0xf]
  %v44 = vld [vmem:[%s1 + $0x1c] sm:$0xf]
  %v45 = vld [vmem:[%s1 + $0x20] sm:$0xf]
  %v46 = vld [vmem:[%s1 + $0x24] sm:$0xf]
  %v47 = vld [vmem:[%s1 + $0x28] sm:$0xf]
  %v48 = vld [vmem:[%s1 + $0x2c] sm:$0xf]
  %v49 = vld [vmem:[%s1 + $0x30] sm:$0xf]
  %v50 = vld [vmem:[%s1 + $0x34] sm:$0xf]
  %v51 = vld [vmem:[%s1 + $0x38] sm:$0xf]
  %v52 = vld [vmem:[%s1 + $0x3c] sm:$0xf]
  %v69 = vunpack.c.l.b16 %v21
  %v70 = vunpack.c.l.b16 %v22
  %v71 = vunpack.c.l.b16 %v23
  %v72 = vunpack.c.l.b16 %v24
  %v73 = vunpack.c.l.b16 %v25
  %v74 = vunpack.c.l.b16 %v26
  %v75 = vunpack.c.l.b16 %v27
  %v76 = vunpack.c.l.b16 %v28
  %v77 = vunpack.c.l.b16 %v29
  %v78 = vunpack.c.l.b16 %v30
  %v79 = vunpack.c.l.b16 %v31
  %v80 = vunpack.c.l.b16 %v32
  %v81 = vunpack.c.l.b16 %v33
  %v82 = vunpack.c.l.b16 %v34
  %v83 = vunpack.c.l.b16 %v35
  %v84 = vunpack.c.l.b16 %v36
  %v85 = vpack.c.b16 %v70, %v69
  %v86 = vpack.c.b16 %v72, %v71
  %v87 = vpack.c.b16 %v74, %v73
  %v88 = vpack.c.b16 %v76, %v75
  %v89 = vpack.c.b16 %v78, %v77
  %v90 = vpack.c.b16 %v80, %v79
  %v91 = vpack.c.b16 %v82, %v81
  %v92 = vpack.c.b16 %v84, %v83
  %v117 = vunpack.c.l.b16 %v37
  %v118 = vunpack.c.l.b16 %v38
  %v119 = vunpack.c.l.b16 %v39
  %v120 = vunpack.c.l.b16 %v40
  %v121 = vunpack.c.l.b16 %v41
  %v122 = vunpack.c.l.b16 %v42
  %v123 = vunpack.c.l.b16 %v43
  %v124 = vunpack.c.l.b16 %v44
  %v125 = vunpack.c.l.b16 %v45
  %v126 = vunpack.c.l.b16 %v46
  %v127 = vunpack.c.l.b16 %v47
  %v128 = vunpack.c.l.b16 %v48
  %v129 = vunpack.c.l.b16 %v49
  %v130 = vunpack.c.l.b16 %v50
  %v131 = vunpack.c.l.b16 %v51
  %v132 = vunpack.c.l.b16 %v52
  %v133 = vpack.c.b16 %v118, %v117
  %v134 = vpack.c.b16 %v120, %v119
  %v135 = vpack.c.b16 %v122, %v121
  %v136 = vpack.c.b16 %v124, %v123
  %v137 = vpack.c.b16 %v126, %v125
  %v138 = vpack.c.b16 %v128, %v127
  %v139 = vpack.c.b16 %v130, %v129
  %v140 = vpack.c.b16 %v132, %v131
  %149 = vmatprep.subr.bf16.mxu0 0
  %150 = vmatpush1.bf16.msra.mxu0 %v140
  %151 = vmatprep.subr.bf16.mxu0 0
  %152 = vmatpush1.bf16.msra.mxu0 %v139
  %153 = vmatprep.subr.bf16.mxu0 0
  %154 = vmatpush1.bf16.msra.mxu0 %v138
  %155 = vmatprep.subr.bf16.mxu0 0
  %156 = vmatpush1.bf16.msra.mxu0 %v137
  %157 = vmatprep.subr.bf16.mxu0 0
  %158 = vmatpush1.bf16.msra.mxu0 %v136
  %159 = vmatprep.subr.bf16.mxu0 0
  %160 = vmatpush1.bf16.msra.mxu0 %v135
  %161 = vmatprep.subr.bf16.mxu0 0
  %162 = vmatpush1.bf16.msra.mxu0 %v134
  %163 = vmatprep.subr.bf16.mxu0 0
  %164 = vmatpush1.bf16.msra.mxu0 %v133
  %165 = vmatprep.subr.bf16.mxu0 0
  %166 = vmatpush2.bf16.msra.mxu0 0
  %167 = vmatprep.subr.bf16.mxu0 0
  %168 = vmatpush2.bf16.msra.mxu0 0
  %169 = vmatprep.subr.bf16.mxu0 0
  %170 = vmatpush2.bf16.msra.mxu0 0
  %171 = vmatprep.subr.bf16.mxu0 0
  %172 = vmatpush2.bf16.msra.mxu0 0
  %173 = vmatprep.subr.bf16.mxu0 0
  %174 = vmatpush2.bf16.msra.mxu0 0
  %175 = vmatprep.subr.bf16.mxu0 0
  %176 = vmatpush2.bf16.msra.mxu0 0
  %177 = vmatprep.subr.bf16.mxu0 0
  %178 = vmatpush2.bf16.msra.mxu0 0
  %179 = vmatprep.subr.bf16.mxu0 0
  %180 = vmatpush2.bf16.msra.mxu0 0
  %181 = vmatprep.mubr.bf16.mxu0 0
  %182 = vmatmul.mubr.bf16.gmra.mxu0 %v85
  %v183 = vpop.f32.mrf.mxu0
  %v184 = vadd.f32 0.0, %v183
  %v185 = vpop.f32.mrf.mxu0
  %v186 = vpop.f32.mrf.mxu0
  %v187 = vadd.f32 0.0, %v186
  %v188 = vpop.f32.mrf.mxu0
  %189 = vmatprep.mubr.bf16.mxu0 0
  %190 = vmatmul.mubr.bf16.gmra.mxu0 %v86
  %v191 = vpop.f32.mrf.mxu0
  %v192 = vadd.f32 0.0, %v191
  %v193 = vpop.f32.mrf.mxu0
  %v194 = vpop.f32.mrf.mxu0
  %v195 = vadd.f32 0.0, %v194
  %v196 = vpop.f32.mrf.mxu0
  %197 = vmatprep.mubr.bf16.mxu0 0
  %198 = vmatmul.mubr.bf16.gmra.mxu0 %v87
  %v199 = vpop.f32.mrf.mxu0
  %v200 = vadd.f32 0.0, %v199
  %v201 = vpop.f32.mrf.mxu0
  %v202 = vpop.f32.mrf.mxu0
  %v203 = vadd.f32 0.0, %v202
  %v204 = vpop.f32.mrf.mxu0
  %205 = vmatprep.mubr.bf16.mxu0 0
  %206 = vmatmul.mubr.bf16.gmra.mxu0 %v88
  %v207 = vpop.f32.mrf.mxu0
  %v208 = vadd.f32 0.0, %v207
  %v209 = vpop.f32.mrf.mxu0
  %v210 = vpop.f32.mrf.mxu0
  %v211 = vadd.f32 0.0, %v210
  %v212 = vpop.f32.mrf.mxu0
  %213 = vmatprep.mubr.bf16.mxu0 0
  %214 = vmatmul.mubr.bf16.gmra.mxu0 %v89
  %v215 = vpop.f32.mrf.mxu0
  %v216 = vadd.f32 0.0, %v215
  %v217 = vpop.f32.mrf.mxu0
  %v218 = vpop.f32.mrf.mxu0
  %v219 = vadd.f32 0.0, %v218
  %v220 = vpop.f32.mrf.mxu0
  %221 = vmatprep.mubr.bf16.mxu0 0
  %222 = vmatmul.mubr.bf16.gmra.mxu0 %v90
  %v223 = vpop.f32.mrf.mxu0
  %v224 = vadd.f32 0.0, %v223
  %v225 = vpop.f32.mrf.mxu0
  %v226 = vpop.f32.mrf.mxu0
  %v227 = vadd.f32 0.0, %v226
  %v228 = vpop.f32.mrf.mxu0
  %229 = vmatprep.mubr.bf16.mxu0 0
  %230 = vmatmul.mubr.bf16.gmra.mxu0 %v91
  %v231 = vpop.f32.mrf.mxu0
  %v232 = vadd.f32 0.0, %v231
  %v233 = vpop.f32.mrf.mxu0
  %v234 = vpop.f32.mrf.mxu0
  %v235 = vadd.f32 0.0, %v234
  %v236 = vpop.f32.mrf.mxu0
  %237 = vmatprep.mubr.bf16.mxu0 0
  %238 = vmatmul.mubr.bf16.gmra.mxu0 %v92
  %v239 = vpop.f32.mrf.mxu0
  %v240 = vadd.f32 0.0, %v239
  %v241 = vpop.f32.mrf.mxu0
  %v242 = vpop.f32.mrf.mxu0
  %v243 = vadd.f32 0.0, %v242
  %v244 = vpop.f32.mrf.mxu0
  %245 = vdwg.mxu0
  %v246 = vpack.c.bf16 %v187, %v184
  %v247 = vpack.c.bf16 %v195, %v192
  %v248 = vpack.c.bf16 %v203, %v200
  %v249 = vpack.c.bf16 %v211, %v208
  %v250 = vpack.c.bf16 %v219, %v216
  %v251 = vpack.c.bf16 %v227, %v224
  %v252 = vpack.c.bf16 %v235, %v232
  %v253 = vpack.c.bf16 %v243, %v240
  %v254 = vld [vmem:[%s3] sm:$0xf]
  %v255 = vld [vmem:[%s3 + $0x4] sm:$0xf]
  %v256 = vld [vmem:[%s2] sm:$0xf]
  %v257 = vld [vmem:[%s2 + $0x4] sm:$0xf]
  %v258 = vld [vmem:[%s2 + $0x8] sm:$0xf]
  %v259 = vld [vmem:[%s2 + $0xc] sm:$0xf]
  %v260 = vld [vmem:[%s2 + $0x10] sm:$0xf]
  %v261 = vld [vmem:[%s2 + $0x14] sm:$0xf]
  %v262 = vld [vmem:[%s2 + $0x18] sm:$0xf]
  %v263 = vld [vmem:[%s2 + $0x1c] sm:$0xf]
  %v264 = vld [vmem:[%s2 + $0x20] sm:$0xf]
  %v265 = vld [vmem:[%s2 + $0x24] sm:$0xf]
  %v266 = vld [vmem:[%s2 + $0x28] sm:$0xf]
  %v267 = vld [vmem:[%s2 + $0x2c] sm:$0xf]
  %v268 = vld [vmem:[%s2 + $0x30] sm:$0xf]
  %v269 = vld [vmem:[%s2 + $0x34] sm:$0xf]
  %v270 = vld [vmem:[%s2 + $0x38] sm:$0xf]
  %v271 = vld [vmem:[%s2 + $0x3c] sm:$0xf]
  %v272 = vld [vmem:[%s3 + $0x8] sm:$0xf]
  %v273 = vld [vmem:[%s3 + $0xc] sm:$0xf]
  %v290 = vunpack.c.l.b16 %v256
  %v291 = vunpack.c.l.b16 %v257
  %v292 = vunpack.c.l.b16 %v258
  %v293 = vunpack.c.l.b16 %v259
  %v294 = vunpack.c.l.b16 %v260
  %v295 = vunpack.c.l.b16 %v261
  %v296 = vunpack.c.l.b16 %v262
  %v297 = vunpack.c.l.b16 %v263
  %v298 = vunpack.c.l.b16 %v264
  %v299 = vunpack.c.l.b16 %v265
  %v300 = vunpack.c.l.b16 %v266
  %v301 = vunpack.c.l.b16 %v267
  %v302 = vunpack.c.l.b16 %v268
  %v303 = vunpack.c.l.b16 %v269
  %v304 = vunpack.c.l.b16 %v270
  %v305 = vunpack.c.l.b16 %v271
  %v306 = vpack.c.b16 %v291, %v290
  %v307 = vpack.c.b16 %v293, %v292
  %v308 = vpack.c.b16 %v295, %v294
  %v309 = vpack.c.b16 %v297, %v296
  %v310 = vpack.c.b16 %v299, %v298
  %v311 = vpack.c.b16 %v301, %v300
  %v312 = vpack.c.b16 %v303, %v302
  %v313 = vpack.c.b16 %v305, %v304
  %v316 = vunpack.c.l.b16 %v272
  %v317 = vunpack.c.l.b16 %v273
  %v318 = vpack.c.b16 %v317, %v316
  %vm320 = vcmask 130048
  %v322 = vsel %vm320, %v306, 0
  %v325 = vsel %vm320, %v307, 0
  %v328 = vsel %vm320, %v308, 0
  %v331 = vsel %vm320, %v309, 0
  %v334 = vsel %vm320, %v310, 0
  %v337 = vsel %vm320, %v311, 0
  %v340 = vsel %vm320, %v312, 0
  %v343 = vsel %vm320, %v313, 0
  %345 = vmatprep.subr.bf16.mxu0 0
  %346 = vmatpush1.bf16.msra.mxu0 0
  %347 = vmatprep.subr.bf16.mxu0 0
  %348 = vmatpush1.bf16.msra.mxu0 0
  %349 = vmatprep.subr.bf16.mxu0 0
  %350 = vmatpush1.bf16.msra.mxu0 0
  %351 = vmatprep.subr.bf16.mxu0 0
  %352 = vmatpush1.bf16.msra.mxu0 0
  %353 = vmatprep.subr.bf16.mxu0 0
  %354 = vmatpush1.bf16.msra.mxu0 0
  %355 = vmatprep.subr.bf16.mxu0 0
  %356 = vmatpush1.bf16.msra.mxu0 0
  %357 = vmatprep.subr.bf16.mxu0 0
  %358 = vmatpush1.bf16.msra.mxu0 0
  %359 = vmatprep.subr.bf16.mxu0 0
  %360 = vmatpush1.bf16.msra.mxu0 %v318
  %361 = vmatprep.subr.bf16.mxu0 0
  %362 = vmatpush2.bf16.msra.mxu0 0
  %363 = vmatprep.subr.bf16.mxu0 0
  %364 = vmatpush2.bf16.msra.mxu0 0
  %365 = vmatprep.subr.bf16.mxu0 0
  %366 = vmatpush2.bf16.msra.mxu0 0
  %367 = vmatprep.subr.bf16.mxu0 0
  %368 = vmatpush2.bf16.msra.mxu0 0
  %369 = vmatprep.subr.bf16.mxu0 0
  %370 = vmatpush2.bf16.msra.mxu0 0
  %371 = vmatprep.subr.bf16.mxu0 0
  %372 = vmatpush2.bf16.msra.mxu0 0
  %373 = vmatprep.subr.bf16.mxu0 0
  %374 = vmatpush2.bf16.msra.mxu0 0
  %375 = vmatprep.subr.bf16.mxu0 0
  %376 = vmatpush2.bf16.msra.mxu0 0
  %377 = vmatprep.mubr.bf16.mxu0 0
  %378 = vmatmul.mubr.bf16.gmra.mxu0 %v322
  %v379 = vpop.f32.mrf.mxu0
  %v380 = vadd.f32 0.0, %v379
  %v381 = vpop.f32.mrf.mxu0
  %v382 = vpop.f32.mrf.mxu0
  %v383 = vadd.f32 0.0, %v382
  %v384 = vpop.f32.mrf.mxu0
  %385 = vmatprep.mubr.bf16.mxu0 0
  %386 = vmatmul.mubr.bf16.gmra.mxu0 %v325
  %v387 = vpop.f32.mrf.mxu0
  %v388 = vadd.f32 0.0, %v387
  %v389 = vpop.f32.mrf.mxu0
  %v390 = vpop.f32.mrf.mxu0
  %v391 = vadd.f32 0.0, %v390
  %v392 = vpop.f32.mrf.mxu0
  %393 = vmatprep.mubr.bf16.mxu0 0
  %394 = vmatmul.mubr.bf16.gmra.mxu0 %v328
  %v395 = vpop.f32.mrf.mxu0
  %v396 = vadd.f32 0.0, %v395
  %v397 = vpop.f32.mrf.mxu0
  %v398 = vpop.f32.mrf.mxu0
  %v399 = vadd.f32 0.0, %v398
  %v400 = vpop.f32.mrf.mxu0
  %401 = vmatprep.mubr.bf16.mxu0 0
  %402 = vmatmul.mubr.bf16.gmra.mxu0 %v331
  %v403 = vpop.f32.mrf.mxu0
  %v404 = vadd.f32 0.0, %v403
  %v405 = vpop.f32.mrf.mxu0
  %v406 = vpop.f32.mrf.mxu0
  %v407 = vadd.f32 0.0, %v406
  %v408 = vpop.f32.mrf.mxu0
  %409 = vmatprep.mubr.bf16.mxu0 0
  %410 = vmatmul.mubr.bf16.gmra.mxu0 %v334
  %v411 = vpop.f32.mrf.mxu0
  %v412 = vadd.f32 0.0, %v411
  %v413 = vpop.f32.mrf.mxu0
  %v414 = vpop.f32.mrf.mxu0
  %v415 = vadd.f32 0.0, %v414
  %v416 = vpop.f32.mrf.mxu0
  %417 = vmatprep.mubr.bf16.mxu0 0
  %418 = vmatmul.mubr.bf16.gmra.mxu0 %v337
  %v419 = vpop.f32.mrf.mxu0
  %v420 = vadd.f32 0.0, %v419
  %v421 = vpop.f32.mrf.mxu0
  %v422 = vpop.f32.mrf.mxu0
  %v423 = vadd.f32 0.0, %v422
  %v424 = vpop.f32.mrf.mxu0
  %425 = vmatprep.mubr.bf16.mxu0 0
  %426 = vmatmul.mubr.bf16.gmra.mxu0 %v340
  %v427 = vpop.f32.mrf.mxu0
  %v428 = vadd.f32 0.0, %v427
  %v429 = vpop.f32.mrf.mxu0
  %v430 = vpop.f32.mrf.mxu0
  %v431 = vadd.f32 0.0, %v430
  %v432 = vpop.f32.mrf.mxu0
  %433 = vmatprep.mubr.bf16.mxu0 0
  %434 = vmatmul.mubr.bf16.gmra.mxu0 %v343
  %v435 = vpop.f32.mrf.mxu0
  %v436 = vadd.f32 0.0, %v435
  %v437 = vpop.f32.mrf.mxu0
  %v438 = vpop.f32.mrf.mxu0
  %v439 = vadd.f32 0.0, %v438
  %v440 = vpop.f32.mrf.mxu0
  %441 = vdwg.mxu0
  %v444 = vunpack.c.l.b16 %v254
  %v445 = vunpack.c.l.b16 %v255
  %v446 = vpack.c.b16 %v445, %v444
  %v449 = vsel %vm320, %v246, 0
  %v452 = vsel %vm320, %v247, 0
  %v455 = vsel %vm320, %v248, 0
  %v458 = vsel %vm320, %v249, 0
  %v461 = vsel %vm320, %v250, 0
  %v464 = vsel %vm320, %v251, 0
  %v467 = vsel %vm320, %v252, 0
  %v470 = vsel %vm320, %v253, 0
  %472 = vmatprep.subr.bf16.mxu0 0
  %473 = vmatpush1.bf16.msra.mxu0 0
  %474 = vmatprep.subr.bf16.mxu0 0
  %475 = vmatpush1.bf16.msra.mxu0 0
  %476 = vmatprep.subr.bf16.mxu0 0
  %477 = vmatpush1.bf16.msra.mxu0 0
  %478 = vmatprep.subr.bf16.mxu0 0
  %479 = vmatpush1.bf16.msra.mxu0 0
  %480 = vmatprep.subr.bf16.mxu0 0
  %481 = vmatpush1.bf16.msra.mxu0 0
  %482 = vmatprep.subr.bf16.mxu0 0
  %483 = vmatpush1.bf16.msra.mxu0 0
  %484 = vmatprep.subr.bf16.mxu0 0
  %485 = vmatpush1.bf16.msra.mxu0 0
  %486 = vmatprep.subr.bf16.mxu0 0
  %487 = vmatpush1.bf16.msra.mxu0 %v446
  %488 = vmatprep.subr.bf16.mxu0 0
  %489 = vmatpush2.bf16.msra.mxu0 0
  %490 = vmatprep.subr.bf16.mxu0 0
  %491 = vmatpush2.bf16.msra.mxu0 0
  %492 = vmatprep.subr.bf16.mxu0 0
  %493 = vmatpush2.bf16.msra.mxu0 0
  %494 = vmatprep.subr.bf16.mxu0 0
  %495 = vmatpush2.bf16.msra.mxu0 0
  %496 = vmatprep.subr.bf16.mxu0 0
  %497 = vmatpush2.bf16.msra.mxu0 0
  %498 = vmatprep.subr.bf16.mxu0 0
  %499 = vmatpush2.bf16.msra.mxu0 0
  %500 = vmatprep.subr.bf16.mxu0 0
  %501 = vmatpush2.bf16.msra.mxu0 0
  %502 = vmatprep.subr.bf16.mxu0 0
  %503 = vmatpush2.bf16.msra.mxu0 0
  %504 = vmatprep.mubr.bf16.mxu0 0
  %505 = vmatmul.mubr.bf16.gmra.mxu0 %v449
  %v506 = vpop.f32.mrf.mxu0
  %v507 = vadd.f32 %v380, %v506
  %v508 = vpop.f32.mrf.mxu0
  %v509 = vpop.f32.mrf.mxu0
  %v510 = vadd.f32 %v383, %v509
  %v511 = vpop.f32.mrf.mxu0
  %512 = vmatprep.mubr.bf16.mxu0 0
  %513 = vmatmul.mubr.bf16.gmra.mxu0 %v452
  %v514 = vpop.f32.mrf.mxu0
  %v515 = vadd.f32 %v388, %v514
  %v516 = vpop.f32.mrf.mxu0
  %v517 = vpop.f32.mrf.mxu0
  %v518 = vadd.f32 %v391, %v517
  %v519 = vpop.f32.mrf.mxu0
  %520 = vmatprep.mubr.bf16.mxu0 0
  %521 = vmatmul.mubr.bf16.gmra.mxu0 %v455
  %v522 = vpop.f32.mrf.mxu0
  %v523 = vadd.f32 %v396, %v522
  %v524 = vpop.f32.mrf.mxu0
  %v525 = vpop.f32.mrf.mxu0
  %v526 = vadd.f32 %v399, %v525
  %v527 = vpop.f32.mrf.mxu0
  %528 = vmatprep.mubr.bf16.mxu0 0
  %529 = vmatmul.mubr.bf16.gmra.mxu0 %v458
  %v530 = vpop.f32.mrf.mxu0
  %v531 = vadd.f32 %v404, %v530
  %v532 = vpop.f32.mrf.mxu0
  %v533 = vpop.f32.mrf.mxu0
  %v534 = vadd.f32 %v407, %v533
  %v535 = vpop.f32.mrf.mxu0
  %536 = vmatprep.mubr.bf16.mxu0 0
  %537 = vmatmul.mubr.bf16.gmra.mxu0 %v461
  %v538 = vpop.f32.mrf.mxu0
  %v539 = vadd.f32 %v412, %v538
  %v540 = vpop.f32.mrf.mxu0
  %v541 = vpop.f32.mrf.mxu0
  %v542 = vadd.f32 %v415, %v541
  %v543 = vpop.f32.mrf.mxu0
  %544 = vmatprep.mubr.bf16.mxu0 0
  %545 = vmatmul.mubr.bf16.gmra.mxu0 %v464
  %v546 = vpop.f32.mrf.mxu0
  %v547 = vadd.f32 %v420, %v546
  %v548 = vpop.f32.mrf.mxu0
  %v549 = vpop.f32.mrf.mxu0
  %v550 = vadd.f32 %v423, %v549
  %v551 = vpop.f32.mrf.mxu0
  %552 = vmatprep.mubr.bf16.mxu0 0
  %553 = vmatmul.mubr.bf16.gmra.mxu0 %v467
  %v554 = vpop.f32.mrf.mxu0
  %v555 = vadd.f32 %v428, %v554
  %v556 = vpop.f32.mrf.mxu0
  %v557 = vpop.f32.mrf.mxu0
  %v558 = vadd.f32 %v431, %v557
  %v559 = vpop.f32.mrf.mxu0
  %560 = vmatprep.mubr.bf16.mxu0 0
  %561 = vmatmul.mubr.bf16.gmra.mxu0 %v470
  %v562 = vpop.f32.mrf.mxu0
  %v563 = vadd.f32 %v436, %v562
  %v564 = vpop.f32.mrf.mxu0
  %v565 = vpop.f32.mrf.mxu0
  %v566 = vadd.f32 %v439, %v565
  %v567 = vpop.f32.mrf.mxu0
  %568 = vdwg.mxu0
  %v569 = vld [vmem:[%s4] sm:$0x1]
  %v571 = vlaneseq
  %v572 = vshrl.u32 %v571, 7
  %v573 = vsub.s32 0, %v572
  %v574 = vrot.slane %v569, %v573
  %v576 = vadd.f32 %v507, %v574
  %v577 = vadd.f32 %v510, %v574
  %v578 = vadd.f32 %v515, %v574
  %v579 = vadd.f32 %v518, %v574
  %v580 = vadd.f32 %v523, %v574
  %v581 = vadd.f32 %v526, %v574
  %v582 = vadd.f32 %v531, %v574
  %v583 = vadd.f32 %v534, %v574
  %v584 = vadd.f32 %v539, %v574
  %v585 = vadd.f32 %v542, %v574
  %v586 = vadd.f32 %v547, %v574
  %v587 = vadd.f32 %v550, %v574
  %v588 = vadd.f32 %v555, %v574
  %v589 = vadd.f32 %v558, %v574
  %v590 = vadd.f32 %v563, %v574
  %v591 = vadd.f32 %v566, %v574
  %v592 = vmax.f32 %v576, 0.0
  %v593 = vmax.f32 %v577, 0.0
  %v594 = vmax.f32 %v578, 0.0
  %v595 = vmax.f32 %v579, 0.0
  %v596 = vmax.f32 %v580, 0.0
  %v597 = vmax.f32 %v581, 0.0
  %v598 = vmax.f32 %v582, 0.0
  %v599 = vmax.f32 %v583, 0.0
  %v600 = vmax.f32 %v584, 0.0
  %v601 = vmax.f32 %v585, 0.0
  %v602 = vmax.f32 %v586, 0.0
  %v603 = vmax.f32 %v587, 0.0
  %v604 = vmax.f32 %v588, 0.0
  %v605 = vmax.f32 %v589, 0.0
  %v606 = vmax.f32 %v590, 0.0
  %v607 = vmax.f32 %v591, 0.0
  %v608 = vpack.c.bf16 %v593, %v592
  %v609 = vpack.c.bf16 %v595, %v594
  %v610 = vpack.c.bf16 %v597, %v596
  %v611 = vpack.c.bf16 %v599, %v598
  %v612 = vpack.c.bf16 %v601, %v600
  %v613 = vpack.c.bf16 %v603, %v602
  %v614 = vpack.c.bf16 %v605, %v604
  %v615 = vpack.c.bf16 %v607, %v606
  %v624 = vunpack.c.l.b16 %v608
  %v625 = vunpack.c.h.b16 %v608
  %v626 = vunpack.c.l.b16 %v609
  %v627 = vunpack.c.h.b16 %v609
  %v628 = vunpack.c.l.b16 %v610
  %v629 = vunpack.c.h.b16 %v610
  %v630 = vunpack.c.l.b16 %v611
  %v631 = vunpack.c.h.b16 %v611
  %v632 = vunpack.c.l.b16 %v612
  %v633 = vunpack.c.h.b16 %v612
  %v634 = vunpack.c.l.b16 %v613
  %v635 = vunpack.c.h.b16 %v613
  %v636 = vunpack.c.l.b16 %v614
  %v637 = vunpack.c.h.b16 %v614
  %v638 = vunpack.c.l.b16 %v615
  %v639 = vunpack.c.h.b16 %v615
  %v640 = vpack.c.b16 %v624, %v624
  %v641 = vpack.c.b16 %v625, %v625
  %v642 = vpack.c.b16 %v626, %v626
  %v643 = vpack.c.b16 %v627, %v627
  %v644 = vpack.c.b16 %v628, %v628
  %v645 = vpack.c.b16 %v629, %v629
  %v646 = vpack.c.b16 %v630, %v630
  %v647 = vpack.c.b16 %v631, %v631
  %v648 = vpack.c.b16 %v632, %v632
  %v649 = vpack.c.b16 %v633, %v633
  %v650 = vpack.c.b16 %v634, %v634
  %v651 = vpack.c.b16 %v635, %v635
  %v652 = vpack.c.b16 %v636, %v636
  %v653 = vpack.c.b16 %v637, %v637
  %v654 = vpack.c.b16 %v638, %v638
  %v655 = vpack.c.b16 %v639, %v639
  %vm672 = vcmask 257024
  %673 = vst.msk [vmem:[%s5] sm:$0xf] %vm672, %v640
  %674 = vst.msk [vmem:[%s5 + $0x4] sm:$0xf] %vm672, %v641
  %675 = vst.msk [vmem:[%s5 + $0x8] sm:$0xf] %vm672, %v642
  %676 = vst.msk [vmem:[%s5 + $0xc] sm:$0xf] %vm672, %v643
  %677 = vst.msk [vmem:[%s5 + $0x10] sm:$0xf] %vm672, %v644
  %678 = vst.msk [vmem:[%s5 + $0x14] sm:$0xf] %vm672, %v645
  %679 = vst.msk [vmem:[%s5 + $0x18] sm:$0xf] %vm672, %v646
  %680 = vst.msk [vmem:[%s5 + $0x1c] sm:$0xf] %vm672, %v647
  %681 = vst.msk [vmem:[%s5 + $0x20] sm:$0xf] %vm672, %v648
  %682 = vst.msk [vmem:[%s5 + $0x24] sm:$0xf] %vm672, %v649
  %683 = vst.msk [vmem:[%s5 + $0x28] sm:$0xf] %vm672, %v650
  %684 = vst.msk [vmem:[%s5 + $0x2c] sm:$0xf] %vm672, %v651
  %685 = vst.msk [vmem:[%s5 + $0x30] sm:$0xf] %vm672, %v652
  %686 = vst.msk [vmem:[%s5 + $0x34] sm:$0xf] %vm672, %v653
  %687 = vst.msk [vmem:[%s5 + $0x38] sm:$0xf] %vm672, %v654
  %688 = vst.msk [vmem:[%s5 + $0x3c] sm:$0xf] %vm672, %v655
  // Predicated region
  $region22: #{gcn_forward.2} parent=0 // pred_check
    _
  $region23: #{gcn_forward.2} parent=0 // pred_check_branch
    %690 = sbr.rel (0) target = $region25
  $region24: #{gcn_forward.2} parent=0 // pred_region
    _
  $region25: #{gcn_forward.2} parent=0 // pred_fallthru
    _
  // Predicated region
  $region26: #{gcn_forward.2} parent=0 // pred_check
    _
  $region27: #{gcn_forward.2} parent=0 // pred_check_branch
    %692 = sbr.rel (0) target = $region29
  $region28: #{gcn_forward.2} parent=0 // pred_region
    _
  $region29: #{gcn_forward.2} parent=0 // pred_fallthru
    _

// kernel: gcn_forward.3
$region0: #{gcn_forward.3}
  #allocation0 [shape = 'u32[]', space=smem, size = 0x4, offset = 0x4, fixed_abs, tag = 'smem constant byte address 0x4 - core index']
  #allocation1 [shape = 'u32[144,128]{1,0:T(1,128)}', space=vmem, size = 0x12000, scoped, tag = 'internal scratch']
  %s0 = inlined_call_operand.vmem [shape: bf16[128,128], index: 0, kind: input, shape index: {}]
  %s1 = inlined_call_operand.vmem [shape: bf16[128,32], index: 1, kind: input, shape index: {}, may-alias: {1,2}]
  %s2 = inlined_call_operand.vmem [shape: bf16[128,32], index: 2, kind: input, shape index: {}, may-alias: {1,2}]
  %s3 = inlined_call_operand.vmem [shape: bf16[64,32], index: 3, kind: input, shape index: {}]
  %s4 = inlined_call_operand.vmem [shape: f32[1,32], index: 4, kind: input, shape index: {}]
  %s5 = inlined_call_operand.vmem [shape: bf16[32,32], index: 5, kind: input, shape index: {}]
  %s6 = inlined_call_operand.vmem [shape: f32[1,32], index: 6, kind: input, shape index: {}]
  %s7 = inlined_call_operand.vmem [shape: bf16[32,64], index: 7, kind: input, shape index: {}]
  %s8 = inlined_call_operand.vmem [shape: f32[1,64], index: 8, kind: input, shape index: {}]
  %s9 = inlined_call_operand.vmem [shape: bf16[64,14], index: 9, kind: input, shape index: {}]
  %s10 = inlined_call_operand.vmem [shape: f32[1,14], index: 10, kind: input, shape index: {}]
  %s11 = inlined_call_operand.vmem [shape: bf16[14,2], index: 11, kind: input, shape index: {}]
  %s12 = inlined_call_operand.vmem [shape: f32[1,2], index: 12, kind: input, shape index: {}]
  %s13 = inlined_call_operand.vmem [shape: f32[128,2], index: 13, kind: output, shape index: {}]
  %s14 = sld [smem:[#allocation0]]
  $region62: #{gcn_forward.3} parent=0
    _
  %s16 = ssub.s32 1, %s14
  %s17 = scalar_select 0, %s16, %s14
  // Predicated region
  $region2: #{gcn_forward.3} parent=0 // pred_check
    _
  $region3: #{gcn_forward.3} parent=0 // pred_check_branch
    %19 = sbr.rel (0) target = $region5
  $region4: #{gcn_forward.3} parent=0 // pred_region
    _
  $region5: #{gcn_forward.3} parent=0 // pred_fallthru
    _
  // Predicated region
  $region6: #{gcn_forward.3} parent=0 // pred_check
    _
  $region7: #{gcn_forward.3} parent=0 // pred_check_branch
    %21 = sbr.rel (0) target = $region9
  $region8: #{gcn_forward.3} parent=0 // pred_region
    _
  $region9: #{gcn_forward.3} parent=0 // pred_fallthru
    _
  // Predicated region
  $region10: #{gcn_forward.3} parent=0 // pred_check
    _
  $region11: #{gcn_forward.3} parent=0 // pred_check_branch
    %23 = sbr.rel (0) target = $region13
  $region12: #{gcn_forward.3} parent=0 // pred_region
    _
  $region13: #{gcn_forward.3} parent=0 // pred_fallthru
    _
  // Predicated region
  $region14: #{gcn_forward.3} parent=0 // pred_check
    _
  $region15: #{gcn_forward.3} parent=0 // pred_check_branch
    %25 = sbr.rel (0) target = $region17
  $region16: #{gcn_forward.3} parent=0 // pred_region
    _
  $region17: #{gcn_forward.3} parent=0 // pred_fallthru
    _
  // Predicated region
  $region18: #{gcn_forward.3} parent=0 // pred_check
    _
  $region19: #{gcn_forward.3} parent=0 // pred_check_branch
    %27 = sbr.rel (0) target = $region21
  $region20: #{gcn_forward.3} parent=0 // pred_region
    _
  $region21: #{gcn_forward.3} parent=0 // pred_fallthru
    _
  // Predicated region
  $region22: #{gcn_forward.3} parent=0 // pred_check
    _
  $region23: #{gcn_forward.3} parent=0 // pred_check_branch
    %29 = sbr.rel (0) target = $region25
  $region24: #{gcn_forward.3} parent=0 // pred_region
    _
  $region25: #{gcn_forward.3} parent=0 // pred_fallthru
    _
  // Predicated region
  $region26: #{gcn_forward.3} parent=0 // pred_check
    _
  $region27: #{gcn_forward.3} parent=0 // pred_check_branch
    %31 = sbr.rel (0) target = $region29
  $region28: #{gcn_forward.3} parent=0 // pred_region
    _
  $region29: #{gcn_forward.3} parent=0 // pred_fallthru
    _
  // Predicated region
  $region30: #{gcn_forward.3} parent=0 // pred_check
    _
  $region31: #{gcn_forward.3} parent=0 // pred_check_branch
    %33 = sbr.rel (0) target = $region33
  $region32: #{gcn_forward.3} parent=0 // pred_region
    _
  $region33: #{gcn_forward.3} parent=0 // pred_fallthru
    _
  // Predicated region
  $region34: #{gcn_forward.3} parent=0 // pred_check
    _
  $region35: #{gcn_forward.3} parent=0 // pred_check_branch
    %35 = sbr.rel (0) target = $region37
  $region36: #{gcn_forward.3} parent=0 // pred_region
    _
  $region37: #{gcn_forward.3} parent=0 // pred_fallthru
    _
  // Predicated region
  $region38: #{gcn_forward.3} parent=0 // pred_check
    _
  $region39: #{gcn_forward.3} parent=0 // pred_check_branch
    %37 = sbr.rel (0) target = $region41
  $region40: #{gcn_forward.3} parent=0 // pred_region
    _
  $region41: #{gcn_forward.3} parent=0 // pred_fallthru
    _
  // Predicated region
  $region42: #{gcn_forward.3} parent=0 // pred_check
    _
  $region43: #{gcn_forward.3} parent=0 // pred_check_branch
    %39 = sbr.rel (0) target = $region45
  $region44: #{gcn_forward.3} parent=0 // pred_region
    _
  $region45: #{gcn_forward.3} parent=0 // pred_fallthru
    _
  // Predicated region
  $region46: #{gcn_forward.3} parent=0 // pred_check
    _
  $region47: #{gcn_forward.3} parent=0 // pred_check_branch
    %41 = sbr.rel (0) target = $region49
  $region48: #{gcn_forward.3} parent=0 // pred_region
    _
  $region49: #{gcn_forward.3} parent=0 // pred_fallthru
    _
  // Predicated region
  $region50: #{gcn_forward.3} parent=0 // pred_check
    _
  $region51: #{gcn_forward.3} parent=0 // pred_check_branch
    %43 = sbr.rel (0) target = $region53
  $region52: #{gcn_forward.3} parent=0 // pred_region
    _
  $region53: #{gcn_forward.3} parent=0 // pred_fallthru
    _
  %v45 = vld [vmem:[%s0] sm:$0xf]
  %v46 = vld [vmem:[%s0 + $0x4] sm:$0xf]
  %v47 = vld [vmem:[%s0 + $0x8] sm:$0xf]
  %v48 = vld [vmem:[%s0 + $0xc] sm:$0xf]
  %v49 = vld [vmem:[%s0 + $0x10] sm:$0xf]
  %v50 = vld [vmem:[%s0 + $0x14] sm:$0xf]
  %v51 = vld [vmem:[%s0 + $0x18] sm:$0xf]
  %v52 = vld [vmem:[%s0 + $0x1c] sm:$0xf]
  %v53 = vld [vmem:[%s0 + $0x20] sm:$0xf]
  %v54 = vld [vmem:[%s0 + $0x24] sm:$0xf]
  %v55 = vld [vmem:[%s0 + $0x28] sm:$0xf]
  %v56 = vld [vmem:[%s0 + $0x2c] sm:$0xf]
  %v57 = vld [vmem:[%s0 + $0x30] sm:$0xf]
  %v58 = vld [vmem:[%s0 + $0x34] sm:$0xf]
  %v59 = vld [vmem:[%s0 + $0x38] sm:$0xf]
  %v60 = vld [vmem:[%s0 + $0x3c] sm:$0xf]
  %v61 = vld [vmem:[%s1] sm:$0xf]
  %v62 = vld [vmem:[%s1 + $0x4] sm:$0xf]
  %v63 = vld [vmem:[%s1 + $0x8] sm:$0xf]
  %v64 = vld [vmem:[%s1 + $0xc] sm:$0xf]
  %v65 = vld [vmem:[%s1 + $0x10] sm:$0xf]
  %v66 = vld [vmem:[%s1 + $0x14] sm:$0xf]
  %v67 = vld [vmem:[%s1 + $0x18] sm:$0xf]
  %v68 = vld [vmem:[%s1 + $0x1c] sm:$0xf]
  %v69 = vld [vmem:[%s1 + $0x20] sm:$0xf]
  %v70 = vld [vmem:[%s1 + $0x24] sm:$0xf]
  %v71 = vld [vmem:[%s1 + $0x28] sm:$0xf]
  %v72 = vld [vmem:[%s1 + $0x2c] sm:$0xf]
  %v73 = vld [vmem:[%s1 + $0x30] sm:$0xf]
  %v74 = vld [vmem:[%s1 + $0x34] sm:$0xf]
  %v75 = vld [vmem:[%s1 + $0x38] sm:$0xf]
  %v76 = vld [vmem:[%s1 + $0x3c] sm:$0xf]
  %v93 = vunpack.c.l.b16 %v45
  %v94 = vunpack.c.l.b16 %v46
  %v95 = vunpack.c.l.b16 %v47
  %v96 = vunpack.c.l.b16 %v48
  %v97 = vunpack.c.l.b16 %v49
  %v98 = vunpack.c.l.b16 %v50
  %v99 = vunpack.c.l.b16 %v51
  %v100 = vunpack.c.l.b16 %v52
  %v101 = vunpack.c.l.b16 %v53
  %v102 = vunpack.c.l.b16 %v54
  %v103 = vunpack.c.l.b16 %v55
  %v104 = vunpack.c.l.b16 %v56
  %v105 = vunpack.c.l.b16 %v57
  %v106 = vunpack.c.l.b16 %v58
  %v107 = vunpack.c.l.b16 %v59
  %v108 = vunpack.c.l.b16 %v60
  %v109 = vpack.c.b16 %v94, %v93
  %v110 = vpack.c.b16 %v96, %v95
  %v111 = vpack.c.b16 %v98, %v97
  %v112 = vpack.c.b16 %v100, %v99
  %v113 = vpack.c.b16 %v102, %v101
  %v114 = vpack.c.b16 %v104, %v103
  %v115 = vpack.c.b16 %v106, %v105
  %v116 = vpack.c.b16 %v108, %v107
  %v141 = vunpack.c.l.b16 %v61
  %v142 = vunpack.c.l.b16 %v62
  %v143 = vunpack.c.l.b16 %v63
  %v144 = vunpack.c.l.b16 %v64
  %v145 = vunpack.c.l.b16 %v65
  %v146 = vunpack.c.l.b16 %v66
  %v147 = vunpack.c.l.b16 %v67
  %v148 = vunpack.c.l.b16 %v68
  %v149 = vunpack.c.l.b16 %v69
  %v150 = vunpack.c.l.b16 %v70
  %v151 = vunpack.c.l.b16 %v71
  %v152 = vunpack.c.l.b16 %v72
  %v153 = vunpack.c.l.b16 %v73
  %v154 = vunpack.c.l.b16 %v74
  %v155 = vunpack.c.l.b16 %v75
  %v156 = vunpack.c.l.b16 %v76
  %v157 = vpack.c.b16 %v142, %v141
  %v158 = vpack.c.b16 %v144, %v143
  %v159 = vpack.c.b16 %v146, %v145
  %v160 = vpack.c.b16 %v148, %v147
  %v161 = vpack.c.b16 %v150, %v149
  %v162 = vpack.c.b16 %v152, %v151
  %v163 = vpack.c.b16 %v154, %v153
  %v164 = vpack.c.b16 %v156, %v155
  %173 = vmatprep.subr.bf16.mxu0 0
  %174 = vmatpush1.bf16.msra.mxu0 %v164
  %175 = vmatprep.subr.bf16.mxu0 0
  %176 = vmatpush1.bf16.msra.mxu0 %v163
  %177 = vmatprep.subr.bf16.mxu0 0
  %178 = vmatpush1.bf16.msra.mxu0 %v162
  %179 = vmatprep.subr.bf16.mxu0 0
  %180 = vmatpush1.bf16.msra.mxu0 %v161
  %181 = vmatprep.subr.bf16.mxu0 0
  %182 = vmatpush1.bf16.msra.mxu0 %v160
  %183 = vmatprep.subr.bf16.mxu0 0
  %184 = vmatpush1.bf16.msra.mxu0 %v159
  %185 = vmatprep.subr.bf16.mxu0 0
  %186 = vmatpush1.bf16.msra.mxu0 %v158
  %187 = vmatprep.subr.bf16.mxu0 0
  %188 = vmatpush1.bf16.msra.mxu0 %v157
  %189 = vmatprep.subr.bf16.mxu0 0
  %190 = vmatpush2.bf16.msra.mxu0 0
  %191 = vmatprep.subr.bf16.mxu0 0
  %192 = vmatpush2.bf16.msra.mxu0 0
  %193 = vmatprep.subr.bf16.mxu0 0
  %194 = vmatpush2.bf16.msra.mxu0 0
  %195 = vmatprep.subr.bf16.mxu0 0
  %196 = vmatpush2.bf16.msra.mxu0 0
  %197 = vmatprep.subr.bf16.mxu0 0
  %198 = vmatpush2.bf16.msra.mxu0 0
  %199 = vmatprep.subr.bf16.mxu0 0
  %200 = vmatpush2.bf16.msra.mxu0 0
  %201 = vmatprep.subr.bf16.mxu0 0
  %202 = vmatpush2.bf16.msra.mxu0 0
  %203 = vmatprep.subr.bf16.mxu0 0
  %204 = vmatpush2.bf16.msra.mxu0 0
  %205 = vmatprep.mubr.bf16.mxu0 0
  %206 = vmatmul.mubr.bf16.gmra.mxu0 %v109
  %v207 = vpop.f32.mrf.mxu0
  %v208 = vadd.f32 0.0, %v207
  %v209 = vpop.f32.mrf.mxu0
  %v210 = vpop.f32.mrf.mxu0
  %v211 = vadd.f32 0.0, %v210
  %v212 = vpop.f32.mrf.mxu0
  %213 = vmatprep.mubr.bf16.mxu0 0
  %214 = vmatmul.mubr.bf16.gmra.mxu0 %v110
  %v215 = vpop.f32.mrf.mxu0
  %v216 = vadd.f32 0.0, %v215
  %v217 = vpop.f32.mrf.mxu0
  %v218 = vpop.f32.mrf.mxu0
  %v219 = vadd.f32 0.0, %v218
  %v220 = vpop.f32.mrf.mxu0
  %221 = vmatprep.mubr.bf16.mxu0 0
  %222 = vmatmul.mubr.bf16.gmra.mxu0 %v111
  %v223 = vpop.f32.mrf.mxu0
  %v224 = vadd.f32 0.0, %v223
  %v225 = vpop.f32.mrf.mxu0
  %v226 = vpop.f32.mrf.mxu0
  %v227 = vadd.f32 0.0, %v226
  %v228 = vpop.f32.mrf.mxu0
  %229 = vmatprep.mubr.bf16.mxu0 0
  %230 = vmatmul.mubr.bf16.gmra.mxu0 %v112
  %v231 = vpop.f32.mrf.mxu0
  %v232 = vadd.f32 0.0, %v231
  %v233 = vpop.f32.mrf.mxu0
  %v234 = vpop.f32.mrf.mxu0
  %v235 = vadd.f32 0.0, %v234
  %v236 = vpop.f32.mrf.mxu0
  %237 = vmatprep.mubr.bf16.mxu0 0
  %238 = vmatmul.mubr.bf16.gmra.mxu0 %v113
  %v239 = vpop.f32.mrf.mxu0
  %v240 = vadd.f32 0.0, %v239
  %v241 = vpop.f32.mrf.mxu0
  %v242 = vpop.f32.mrf.mxu0
  %v243 = vadd.f32 0.0, %v242
  %v244 = vpop.f32.mrf.mxu0
  %245 = vmatprep.mubr.bf16.mxu0 0
  %246 = vmatmul.mubr.bf16.gmra.mxu0 %v114
  %v247 = vpop.f32.mrf.mxu0
  %v248 = vadd.f32 0.0, %v247
  %v249 = vpop.f32.mrf.mxu0
  %v250 = vpop.f32.mrf.mxu0
  %v251 = vadd.f32 0.0, %v250
  %v252 = vpop.f32.mrf.mxu0
  %253 = vmatprep.mubr.bf16.mxu0 0
  %254 = vmatmul.mubr.bf16.gmra.mxu0 %v115
  %v255 = vpop.f32.mrf.mxu0
  %v256 = vadd.f32 0.0, %v255
  %v257 = vpop.f32.mrf.mxu0
  %v258 = vpop.f32.mrf.mxu0
  %v259 = vadd.f32 0.0, %v258
  %v260 = vpop.f32.mrf.mxu0
  %261 = vmatprep.mubr.bf16.mxu0 0
  %262 = vmatmul.mubr.bf16.gmra.mxu0 %v116
  %v263 = vpop.f32.mrf.mxu0
  %v264 = vadd.f32 0.0, %v263
  %v265 = vpop.f32.mrf.mxu0
  %v266 = vpop.f32.mrf.mxu0
  %v267 = vadd.f32 0.0, %v266
  %v268 = vpop.f32.mrf.mxu0
  %269 = vdwg.mxu0
  %v270 = vpack.c.bf16 %v211, %v208
  %v271 = vpack.c.bf16 %v219, %v216
  %v272 = vpack.c.bf16 %v227, %v224
  %v273 = vpack.c.bf16 %v235, %v232
  %v274 = vpack.c.bf16 %v243, %v240
  %v275 = vpack.c.bf16 %v251, %v248
  %v276 = vpack.c.bf16 %v259, %v256
  %v277 = vpack.c.bf16 %v267, %v264
  %v278 = vld [vmem:[%s3] sm:$0xf]
  %v279 = vld [vmem:[%s3 + $0x4] sm:$0xf]
  %v280 = vld [vmem:[%s3 + $0x8] sm:$0xf]
  %v281 = vld [vmem:[%s3 + $0xc] sm:$0xf]
  %v282 = vld [vmem:[%s2] sm:$0xf]
  %v283 = vld [vmem:[%s2 + $0x4] sm:$0xf]
  %v284 = vld [vmem:[%s2 + $0x8] sm:$0xf]
  %v285 = vld [vmem:[%s2 + $0xc] sm:$0xf]
  %v286 = vld [vmem:[%s2 + $0x10] sm:$0xf]
  %v287 = vld [vmem:[%s2 + $0x14] sm:$0xf]
  %v288 = vld [vmem:[%s2 + $0x18] sm:$0xf]
  %v289 = vld [vmem:[%s2 + $0x1c] sm:$0xf]
  %v290 = vld [vmem:[%s2 + $0x20] sm:$0xf]
  %v291 = vld [vmem:[%s2 + $0x24] sm:$0xf]
  %v292 = vld [vmem:[%s2 + $0x28] sm:$0xf]
  %v293 = vld [vmem:[%s2 + $0x2c] sm:$0xf]
  %v294 = vld [vmem:[%s2 + $0x30] sm:$0xf]
  %v295 = vld [vmem:[%s2 + $0x34] sm:$0xf]
  %v296 = vld [vmem:[%s2 + $0x38] sm:$0xf]
  %v297 = vld [vmem:[%s2 + $0x3c] sm:$0xf]
  %v298 = vld [vmem:[%s3 + $0x10] sm:$0xf]
  %v299 = vld [vmem:[%s3 + $0x14] sm:$0xf]
  %v300 = vld [vmem:[%s3 + $0x18] sm:$0xf]
  %v301 = vld [vmem:[%s3 + $0x1c] sm:$0xf]
  %v318 = vunpack.c.l.b16 %v282
  %v319 = vunpack.c.l.b16 %v283
  %v320 = vunpack.c.l.b16 %v284
  %v321 = vunpack.c.l.b16 %v285
  %v322 = vunpack.c.l.b16 %v286
  %v323 = vunpack.c.l.b16 %v287
  %v324 = vunpack.c.l.b16 %v288
  %v325 = vunpack.c.l.b16 %v289
  %v326 = vunpack.c.l.b16 %v290
  %v327 = vunpack.c.l.b16 %v291
  %v328 = vunpack.c.l.b16 %v292
  %v329 = vunpack.c.l.b16 %v293
  %v330 = vunpack.c.l.b16 %v294
  %v331 = vunpack.c.l.b16 %v295
  %v332 = vunpack.c.l.b16 %v296
  %v333 = vunpack.c.l.b16 %v297
  %v334 = vpack.c.b16 %v319, %v318
  %v335 = vpack.c.b16 %v321, %v320
  %v336 = vpack.c.b16 %v323, %v322
  %v337 = vpack.c.b16 %v325, %v324
  %v338 = vpack.c.b16 %v327, %v326
  %v339 = vpack.c.b16 %v329, %v328
  %v340 = vpack.c.b16 %v331, %v330
  %v341 = vpack.c.b16 %v333, %v332
  %v346 = vunpack.c.l.b16 %v298
  %v347 = vunpack.c.l.b16 %v299
  %v348 = vunpack.c.l.b16 %v300
  %v349 = vunpack.c.l.b16 %v301
  %v350 = vpack.c.b16 %v347, %v346
  %v351 = vpack.c.b16 %v349, %v348
  %vm354 = vcmask 261120
  %v356 = vsel %vm354, %v334, 0
  %v359 = vsel %vm354, %v335, 0
  %v362 = vsel %vm354, %v336, 0
  %v365 = vsel %vm354, %v337, 0
  %v368 = vsel %vm354, %v338, 0
  %v371 = vsel %vm354, %v339, 0
  %v374 = vsel %vm354, %v340, 0
  %v377 = vsel %vm354, %v341, 0
  %379 = vmatprep.subr.bf16.mxu0 0
  %380 = vmatpush1.bf16.msra.mxu0 0
  %381 = vmatprep.subr.bf16.mxu0 0
  %382 = vmatpush1.bf16.msra.mxu0 0
  %383 = vmatprep.subr.bf16.mxu0 0
  %384 = vmatpush1.bf16.msra.mxu0 0
  %385 = vmatprep.subr.bf16.mxu0 0
  %386 = vmatpush1.bf16.msra.mxu0 0
  %387 = vmatprep.subr.bf16.mxu0 0
  %388 = vmatpush1.bf16.msra.mxu0 0
  %389 = vmatprep.subr.bf16.mxu0 0
  %390 = vmatpush1.bf16.msra.mxu0 0
  %391 = vmatprep.subr.bf16.mxu0 0
  %392 = vmatpush1.bf16.msra.mxu0 %v351
  %393 = vmatprep.subr.bf16.mxu0 0
  %394 = vmatpush1.bf16.msra.mxu0 %v350
  %395 = vmatprep.subr.bf16.mxu0 0
  %396 = vmatpush2.bf16.msra.mxu0 0
  %397 = vmatprep.subr.bf16.mxu0 0
  %398 = vmatpush2.bf16.msra.mxu0 0
  %399 = vmatprep.subr.bf16.mxu0 0
  %400 = vmatpush2.bf16.msra.mxu0 0
  %401 = vmatprep.subr.bf16.mxu0 0
  %402 = vmatpush2.bf16.msra.mxu0 0
  %403 = vmatprep.subr.bf16.mxu0 0
  %404 = vmatpush2.bf16.msra.mxu0 0
  %405 = vmatprep.subr.bf16.mxu0 0
  %406 = vmatpush2.bf16.msra.mxu0 0
  %407 = vmatprep.subr.bf16.mxu0 0
  %408 = vmatpush2.bf16.msra.mxu0 0
  %409 = vmatprep.subr.bf16.mxu0 0
  %410 = vmatpush2.bf16.msra.mxu0 0
  %411 = vmatprep.mubr.bf16.mxu0 0
  %412 = vmatmul.mubr.bf16.gmra.mxu0 %v356
  %v413 = vpop.f32.mrf.mxu0
  %v414 = vadd.f32 0.0, %v413
  %v415 = vpop.f32.mrf.mxu0
  %v416 = vpop.f32.mrf.mxu0
  %v417 = vadd.f32 0.0, %v416
  %v418 = vpop.f32.mrf.mxu0
  %419 = vmatprep.mubr.bf16.mxu0 0
  %420 = vmatmul.mubr.bf16.gmra.mxu0 %v359
  %v421 = vpop.f32.mrf.mxu0
  %v422 = vadd.f32 0.0, %v421
  %v423 = vpop.f32.mrf.mxu0
  %v424 = vpop.f32.mrf.mxu0
  %v425 = vadd.f32 0.0, %v424
  %v426 = vpop.f32.mrf.mxu0
  %427 = vmatprep.mubr.bf16.mxu0 0
  %428 = vmatmul.mubr.bf16.gmra.mxu0 %v362
  %v429 = vpop.f32.mrf.mxu0
  %v430 = vadd.f32 0.0, %v429
  %v431 = vpop.f32.mrf.mxu0
  %v432 = vpop.f32.mrf.mxu0
  %v433 = vadd.f32 0.0, %v432
  %v434 = vpop.f32.mrf.mxu0
  %435 = vmatprep.mubr.bf16.mxu0 0
  %436 = vmatmul.mubr.bf16.gmra.mxu0 %v365
  %v437 = vpop.f32.mrf.mxu0
  %v438 = vadd.f32 0.0, %v437
  %v439 = vpop.f32.mrf.mxu0
  %v440 = vpop.f32.mrf.mxu0
  %v441 = vadd.f32 0.0, %v440
  %v442 = vpop.f32.mrf.mxu0
  %443 = vmatprep.mubr.bf16.mxu0 0
  %444 = vmatmul.mubr.bf16.gmra.mxu0 %v368
  %v445 = vpop.f32.mrf.mxu0
  %v446 = vadd.f32 0.0, %v445
  %v447 = vpop.f32.mrf.mxu0
  %v448 = vpop.f32.mrf.mxu0
  %v449 = vadd.f32 0.0, %v448
  %v450 = vpop.f32.mrf.mxu0
  %451 = vmatprep.mubr.bf16.mxu0 0
  %452 = vmatmul.mubr.bf16.gmra.mxu0 %v371
  %v453 = vpop.f32.mrf.mxu0
  %v454 = vadd.f32 0.0, %v453
  %v455 = vpop.f32.mrf.mxu0
  %v456 = vpop.f32.mrf.mxu0
  %v457 = vadd.f32 0.0, %v456
  %v458 = vpop.f32.mrf.mxu0
  %459 = vmatprep.mubr.bf16.mxu0 0
  %460 = vmatmul.mubr.bf16.gmra.mxu0 %v374
  %v461 = vpop.f32.mrf.mxu0
  %v462 = vadd.f32 0.0, %v461
  %v463 = vpop.f32.mrf.mxu0
  %v464 = vpop.f32.mrf.mxu0
  %v465 = vadd.f32 0.0, %v464
  %v466 = vpop.f32.mrf.mxu0
  %467 = vmatprep.mubr.bf16.mxu0 0
  %468 = vmatmul.mubr.bf16.gmra.mxu0 %v377
  %v469 = vpop.f32.mrf.mxu0
  %v470 = vadd.f32 0.0, %v469
  %v471 = vpop.f32.mrf.mxu0
  %v472 = vpop.f32.mrf.mxu0
  %v473 = vadd.f32 0.0, %v472
  %v474 = vpop.f32.mrf.mxu0
  %475 = vdwg.mxu0
  %v480 = vunpack.c.l.b16 %v278
  %v481 = vunpack.c.l.b16 %v279
  %v482 = vunpack.c.l.b16 %v280
  %v483 = vunpack.c.l.b16 %v281
  %v484 = vpack.c.b16 %v481, %v480
  %v485 = vpack.c.b16 %v483, %v482
  %v489 = vsel %vm354, %v270, 0
  %v492 = vsel %vm354, %v271, 0
  %v495 = vsel %vm354, %v272, 0
  %v498 = vsel %vm354, %v273, 0
  %v501 = vsel %vm354, %v274, 0
  %v504 = vsel %vm354, %v275, 0
  %v507 = vsel %vm354, %v276, 0
  %v510 = vsel %vm354, %v277, 0
  %512 = vmatprep.subr.bf16.mxu0 0
  %513 = vmatpush1.bf16.msra.mxu0 0
  %514 = vmatprep.subr.bf16.mxu0 0
  %515 = vmatpush1.bf16.msra.mxu0 0
  %516 = vmatprep.subr.bf16.mxu0 0
  %517 = vmatpush1.bf16.msra.mxu0 0
  %518 = vmatprep.subr.bf16.mxu0 0
  %519 = vmatpush1.bf16.msra.mxu0 0
  %520 = vmatprep.subr.bf16.mxu0 0
  %521 = vmatpush1.bf16.msra.mxu0 0
  %522 = vmatprep.subr.bf16.mxu0 0
  %523 = vmatpush1.bf16.msra.mxu0 0
  %524 = vmatprep.subr.bf16.mxu0 0
  %525 = vmatpush1.bf16.msra.mxu0 %v485
  %526 = vmatprep.subr.bf16.mxu0 0
  %527 = vmatpush1.bf16.msra.mxu0 %v484
  %528 = vmatprep.subr.bf16.mxu0 0
  %529 = vmatpush2.bf16.msra.mxu0 0
  %530 = vmatprep.subr.bf16.mxu0 0
  %531 = vmatpush2.bf16.msra.mxu0 0
  %532 = vmatprep.subr.bf16.mxu0 0
  %533 = vmatpush2.bf16.msra.mxu0 0
  %534 = vmatprep.subr.bf16.mxu0 0
  %535 = vmatpush2.bf16.msra.mxu0 0
  %536 = vmatprep.subr.bf16.mxu0 0
  %537 = vmatpush2.bf16.msra.mxu0 0
  %538 = vmatprep.subr.bf16.mxu0 0
  %539 = vmatpush2.bf16.msra.mxu0 0
  %540 = vmatprep.subr.bf16.mxu0 0
  %541 = vmatpush2.bf16.msra.mxu0 0
  %542 = vmatprep.subr.bf16.mxu0 0
  %543 = vmatpush2.bf16.msra.mxu0 0
  %544 = vmatprep.mubr.bf16.mxu0 0
  %545 = vmatmul.mubr.bf16.gmra.mxu0 %v489
  %v546 = vpop.f32.mrf.mxu0
  %v547 = vadd.f32 %v414, %v546
  %v548 = vpop.f32.mrf.mxu0
  %v549 = vpop.f32.mrf.mxu0
  %v550 = vadd.f32 %v417, %v549
  %v551 = vpop.f32.mrf.mxu0
  %552 = vmatprep.mubr.bf16.mxu0 0
  %553 = vmatmul.mubr.bf16.gmra.mxu0 %v492
  %v554 = vpop.f32.mrf.mxu0
  %v555 = vadd.f32 %v422, %v554
  %v556 = vpop.f32.mrf.mxu0
  %v557 = vpop.f32.mrf.mxu0
  %v558 = vadd.f32 %v425, %v557
  %v559 = vpop.f32.mrf.mxu0
  %560 = vmatprep.mubr.bf16.mxu0 0
  %561 = vmatmul.mubr.bf16.gmra.mxu0 %v495
  %v562 = vpop.f32.mrf.mxu0
  %v563 = vadd.f32 %v430, %v562
  %v564 = vpop.f32.mrf.mxu0
  %v565 = vpop.f32.mrf.mxu0
  %v566 = vadd.f32 %v433, %v565
  %v567 = vpop.f32.mrf.mxu0
  %568 = vmatprep.mubr.bf16.mxu0 0
  %569 = vmatmul.mubr.bf16.gmra.mxu0 %v498
  %v570 = vpop.f32.mrf.mxu0
  %v571 = vadd.f32 %v438, %v570
  %v572 = vpop.f32.mrf.mxu0
  %v573 = vpop.f32.mrf.mxu0
  %v574 = vadd.f32 %v441, %v573
  %v575 = vpop.f32.mrf.mxu0
  %576 = vmatprep.mubr.bf16.mxu0 0
  %577 = vmatmul.mubr.bf16.gmra.mxu0 %v501
  %v578 = vpop.f32.mrf.mxu0
  %v579 = vadd.f32 %v446, %v578
  %v580 = vpop.f32.mrf.mxu0
  %v581 = vpop.f32.mrf.mxu0
  %v582 = vadd.f32 %v449, %v581
  %v583 = vpop.f32.mrf.mxu0
  %584 = vmatprep.mubr.bf16.mxu0 0
  %585 = vmatmul.mubr.bf16.gmra.mxu0 %v504
  %v586 = vpop.f32.mrf.mxu0
  %v587 = vadd.f32 %v454, %v586
  %v588 = vpop.f32.mrf.mxu0
  %v589 = vpop.f32.mrf.mxu0
  %v590 = vadd.f32 %v457, %v589
  %v591 = vpop.f32.mrf.mxu0
  %592 = vmatprep.mubr.bf16.mxu0 0
  %593 = vmatmul.mubr.bf16.gmra.mxu0 %v507
  %v594 = vpop.f32.mrf.mxu0
  %v595 = vadd.f32 %v462, %v594
  %v596 = vpop.f32.mrf.mxu0
  %v597 = vpop.f32.mrf.mxu0
  %v598 = vadd.f32 %v465, %v597
  %v599 = vpop.f32.mrf.mxu0
  %600 = vmatprep.mubr.bf16.mxu0 0
  %601 = vmatmul.mubr.bf16.gmra.mxu0 %v510
  %v602 = vpop.f32.mrf.mxu0
  %v603 = vadd.f32 %v470, %v602
  %v604 = vpop.f32.mrf.mxu0
  %v605 = vpop.f32.mrf.mxu0
  %v606 = vadd.f32 %v473, %v605
  %v607 = vpop.f32.mrf.mxu0
  %608 = vdwg.mxu0
  %v609 = vld [vmem:[%s4] sm:$0x1]
  %v611 = vlaneseq
  %v612 = vshrl.u32 %v611, 7
  %v613 = vsub.s32 0, %v612
  %v614 = vrot.slane %v609, %v613
  %v616 = vadd.f32 %v547, %v614
  %v617 = vadd.f32 %v550, %v614
  %v618 = vadd.f32 %v555, %v614
  %v619 = vadd.f32 %v558, %v614
  %v620 = vadd.f32 %v563, %v614
  %v621 = vadd.f32 %v566, %v614
  %v622 = vadd.f32 %v571, %v614
  %v623 = vadd.f32 %v574, %v614
  %v624 = vadd.f32 %v579, %v614
  %v625 = vadd.f32 %v582, %v614
  %v626 = vadd.f32 %v587, %v614
  %v627 = vadd.f32 %v590, %v614
  %v628 = vadd.f32 %v595, %v614
  %v629 = vadd.f32 %v598, %v614
  %v630 = vadd.f32 %v603, %v614
  %v631 = vadd.f32 %v606, %v614
  %v632 = vmax.f32 %v616, 0.0
  %v633 = vmax.f32 %v617, 0.0
  %v634 = vmax.f32 %v618, 0.0
  %v635 = vmax.f32 %v619, 0.0
  %v636 = vmax.f32 %v620, 0.0
  %v637 = vmax.f32 %v621, 0.0
  %v638 = vmax.f32 %v622, 0.0
  %v639 = vmax.f32 %v623, 0.0
  %v640 = vmax.f32 %v624, 0.0
  %v641 = vmax.f32 %v625, 0.0
  %v642 = vmax.f32 %v626, 0.0
  %v643 = vmax.f32 %v627, 0.0
  %v644 = vmax.f32 %v628, 0.0
  %v645 = vmax.f32 %v629, 0.0
  %v646 = vmax.f32 %v630, 0.0
  %v647 = vmax.f32 %v631, 0.0
  %v648 = vpack.c.bf16 %v633, %v632
  %v649 = vpack.c.bf16 %v635, %v634
  %v650 = vpack.c.bf16 %v637, %v636
  %v651 = vpack.c.bf16 %v639, %v638
  %v652 = vpack.c.bf16 %v641, %v640
  %v653 = vpack.c.bf16 %v643, %v642
  %v654 = vpack.c.bf16 %v645, %v644
  %v655 = vpack.c.bf16 %v647, %v646
  %v656 = vld [vmem:[%s5] sm:$0xf]
  %v657 = vld [vmem:[%s5 + $0x4] sm:$0xf]
  %v658 = vld [vmem:[%s5 + $0x8] sm:$0xf]
  %v659 = vld [vmem:[%s5 + $0xc] sm:$0xf]
  %v660 = vld [vmem:[%s6] sm:$0x1]
  %v662 = vlaneseq
  %v663 = vshrl.u32 %v662, 7
  %v664 = vsub.s32 0, %v663
  %v665 = vrot.slane %v660, %v664
  %v671 = vunpack.c.l.b16 %v656
  %v672 = vunpack.c.l.b16 %v657
  %v673 = vunpack.c.l.b16 %v658
  %v674 = vunpack.c.l.b16 %v659
  %v675 = vpack.c.b16 %v672, %v671
  %v676 = vpack.c.b16 %v674, %v673
  %v680 = vsel %vm354, %v648, 0
  %v683 = vsel %vm354, %v649, 0
  %v686 = vsel %vm354, %v650, 0
  %v689 = vsel %vm354, %v651, 0
  %v692 = vsel %vm354, %v652, 0
  %v695 = vsel %vm354, %v653, 0
  %v698 = vsel %vm354, %v654, 0
  %v701 = vsel %vm354, %v655, 0
  %703 = vmatprep.subr.bf16.mxu0 0
  %704 = vmatpush1.bf16.msra.mxu0 0
  %705 = vmatprep.subr.bf16.mxu0 0
  %706 = vmatpush1.bf16.msra.mxu0 0
  %707 = vmatprep.subr.bf16.mxu0 0
  %708 = vmatpush1.bf16.msra.mxu0 0
  %709 = vmatprep.subr.bf16.mxu0 0
  %710 = vmatpush1.bf16.msra.mxu0 0
  %711 = vmatprep.subr.bf16.mxu0 0
  %712 = vmatpush1.bf16.msra.mxu0 0
  %713 = vmatprep.subr.bf16.mxu0 0
  %714 = vmatpush1.bf16.msra.mxu0 0
  %715 = vmatprep.subr.bf16.mxu0 0
  %716 = vmatpush1.bf16.msra.mxu0 %v676
  %717 = vmatprep.subr.bf16.mxu0 0
  %718 = vmatpush1.bf16.msra.mxu0 %v675
  %719 = vmatprep.subr.bf16.mxu0 0
  %720 = vmatpush2.bf16.msra.mxu0 0
  %721 = vmatprep.subr.bf16.mxu0 0
  %722 = vmatpush2.bf16.msra.mxu0 0
  %723 = vmatprep.subr.bf16.mxu0 0
  %724 = vmatpush2.bf16.msra.mxu0 0
  %725 = vmatprep.subr.bf16.mxu0 0
  %726 = vmatpush2.bf16.msra.mxu0 0
  %727 = vmatprep.subr.bf16.mxu0 0
  %728 = vmatpush2.bf16.msra.mxu0 0
  %729 = vmatprep.subr.bf16.mxu0 0
  %730 = vmatpush2.bf16.msra.mxu0 0
  %731 = vmatprep.subr.bf16.mxu0 0
  %732 = vmatpush2.bf16.msra.mxu0 0
  %733 = vmatprep.subr.bf16.mxu0 0
  %734 = vmatpush2.bf16.msra.mxu0 0
  %735 = vmatprep.mubr.bf16.mxu0 0
  %736 = vmatmul.mubr.bf16.gmra.mxu0 %v680
  %v737 = vpop.f32.mrf.mxu0
  %v738 = vadd.f32 %v665, %v737
  %v739 = vpop.f32.mrf.mxu0
  %v740 = vpop.f32.mrf.mxu0
  %v741 = vadd.f32 %v665, %v740
  %v742 = vpop.f32.mrf.mxu0
  %743 = vmatprep.mubr.bf16.mxu0 0
  %744 = vmatmul.mubr.bf16.gmra.mxu0 %v683
  %v745 = vpop.f32.mrf.mxu0
  %v746 = vadd.f32 %v665, %v745
  %v747 = vpop.f32.mrf.mxu0
  %v748 = vpop.f32.mrf.mxu0
  %v749 = vadd.f32 %v665, %v748
  %v750 = vpop.f32.mrf.mxu0
  %751 = vmatprep.mubr.bf16.mxu0 0
  %752 = vmatmul.mubr.bf16.gmra.mxu0 %v686
  %v753 = vpop.f32.mrf.mxu0
  %v754 = vadd.f32 %v665, %v753
  %v755 = vpop.f32.mrf.mxu0
  %v756 = vpop.f32.mrf.mxu0
  %v757 = vadd.f32 %v665, %v756
  %v758 = vpop.f32.mrf.mxu0
  %759 = vmatprep.mubr.bf16.mxu0 0
  %760 = vmatmul.mubr.bf16.gmra.mxu0 %v689
  %v761 = vpop.f32.mrf.mxu0
  %v762 = vadd.f32 %v665, %v761
  %v763 = vpop.f32.mrf.mxu0
  %v764 = vpop.f32.mrf.mxu0
  %v765 = vadd.f32 %v665, %v764
  %v766 = vpop.f32.mrf.mxu0
  %767 = vmatprep.mubr.bf16.mxu0 0
  %768 = vmatmul.mubr.bf16.gmra.mxu0 %v692
  %v769 = vpop.f32.mrf.mxu0
  %v770 = vadd.f32 %v665, %v769
  %v771 = vpop.f32.mrf.mxu0
  %v772 = vpop.f32.mrf.mxu0
  %v773 = vadd.f32 %v665, %v772
  %v774 = vpop.f32.mrf.mxu0
  %775 = vmatprep.mubr.bf16.mxu0 0
  %776 = vmatmul.mubr.bf16.gmra.mxu0 %v695
  %v777 = vpop.f32.mrf.mxu0
  %v778 = vadd.f32 %v665, %v777
  %v779 = vpop.f32.mrf.mxu0
  %v780 = vpop.f32.mrf.mxu0
  %v781 = vadd.f32 %v665, %v780
  %v782 = vpop.f32.mrf.mxu0
  %783 = vmatprep.mubr.bf16.mxu0 0
  %784 = vmatmul.mubr.bf16.gmra.mxu0 %v698
  %v785 = vpop.f32.mrf.mxu0
  %v786 = vadd.f32 %v665, %v785
  %v787 = vpop.f32.mrf.mxu0
  %v788 = vpop.f32.mrf.mxu0
  %v789 = vadd.f32 %v665, %v788
  %v790 = vpop.f32.mrf.mxu0
  %791 = vmatprep.mubr.bf16.mxu0 0
  %792 = vmatmul.mubr.bf16.gmra.mxu0 %v701
  %v793 = vpop.f32.mrf.mxu0
  %v794 = vadd.f32 %v665, %v793
  %v795 = vpop.f32.mrf.mxu0
  %v796 = vpop.f32.mrf.mxu0
  %v797 = vadd.f32 %v665, %v796
  %v798 = vpop.f32.mrf.mxu0
  %799 = vdwg.mxu0
  %v800 = vmax.f32 %v738, 0.0
  %v801 = vmax.f32 %v741, 0.0
  %v802 = vmax.f32 %v746, 0.0
  %v803 = vmax.f32 %v749, 0.0
  %v804 = vmax.f32 %v754, 0.0
  %v805 = vmax.f32 %v757, 0.0
  %v806 = vmax.f32 %v762, 0.0
  %v807 = vmax.f32 %v765, 0.0
  %v808 = vmax.f32 %v770, 0.0
  %v809 = vmax.f32 %v773, 0.0
  %v810 = vmax.f32 %v778, 0.0
  %v811 = vmax.f32 %v781, 0.0
  %v812 = vmax.f32 %v786, 0.0
  %v813 = vmax.f32 %v789, 0.0
  %v814 = vmax.f32 %v794, 0.0
  %v815 = vmax.f32 %v797, 0.0
  %v816 = vpack.c.bf16 %v801, %v800
  %v817 = vpack.c.bf16 %v803, %v802
  %v818 = vpack.c.bf16 %v805, %v804
  %v819 = vpack.c.bf16 %v807, %v806
  %v820 = vpack.c.bf16 %v809, %v808
  %v821 = vpack.c.bf16 %v811, %v810
  %v822 = vpack.c.bf16 %v813, %v812
  %v823 = vpack.c.bf16 %v815, %v814
  %v824 = vld [vmem:[%s7] sm:$0xf]
  %v825 = vld [vmem:[%s7 + $0x4] sm:$0xf]
  %v826 = vld [vmem:[%s7 + $0x8] sm:$0xf]
  %v827 = vld [vmem:[%s7 + $0xc] sm:$0xf]
  %v828 = vld [vmem:[%s8] sm:$0x1]
  %v830 = vlaneseq
  %v831 = vshrl.u32 %v830, 7
  %v832 = vsub.s32 0, %v831
  %v833 = vrot.slane %v828, %v832
  %v839 = vunpack.c.l.b16 %v824
  %v840 = vunpack.c.l.b16 %v825
  %v841 = vunpack.c.l.b16 %v826
  %v842 = vunpack.c.l.b16 %v827
  %v843 = vpack.c.b16 %v840, %v839
  %v844 = vpack.c.b16 %v842, %v841
  %v848 = vsel %vm354, %v816, 0
  %v851 = vsel %vm354, %v817, 0
  %v854 = vsel %vm354, %v818, 0
  %v857 = vsel %vm354, %v819, 0
  %v860 = vsel %vm354, %v820, 0
  %v863 = vsel %vm354, %v821, 0
  %v866 = vsel %vm354, %v822, 0
  %v869 = vsel %vm354, %v823, 0
  %871 = vmatprep.subr.bf16.mxu0 0
  %872 = vmatpush1.bf16.msra.mxu0 0
  %873 = vmatprep.subr.bf16.mxu0 0
  %874 = vmatpush1.bf16.msra.mxu0 0
  %875 = vmatprep.subr.bf16.mxu0 0
  %876 = vmatpush1.bf16.msra.mxu0 0
  %877 = vmatprep.subr.bf16.mxu0 0
  %878 = vmatpush1.bf16.msra.mxu0 0
  %879 = vmatprep.subr.bf16.mxu0 0
  %880 = vmatpush1.bf16.msra.mxu0 0
  %881 = vmatprep.subr.bf16.mxu0 0
  %882 = vmatpush1.bf16.msra.mxu0 0
  %883 = vmatprep.subr.bf16.mxu0 0
  %884 = vmatpush1.bf16.msra.mxu0 %v844
  %885 = vmatprep.subr.bf16.mxu0 0
  %886 = vmatpush1.bf16.msra.mxu0 %v843
  %887 = vmatprep.subr.bf16.mxu0 0
  %888 = vmatpush2.bf16.msra.mxu0 0
  %889 = vmatprep.subr.bf16.mxu0 0
  %890 = vmatpush2.bf16.msra.mxu0 0
  %891 = vmatprep.subr.bf16.mxu0 0
  %892 = vmatpush2.bf16.msra.mxu0 0
  %893 = vmatprep.subr.bf16.mxu0 0
  %894 = vmatpush2.bf16.msra.mxu0 0
  %895 = vmatprep.subr.bf16.mxu0 0
  %896 = vmatpush2.bf16.msra.mxu0 0
  %897 = vmatprep.subr.bf16.mxu0 0
  %898 = vmatpush2.bf16.msra.mxu0 0
  %899 = vmatprep.subr.bf16.mxu0 0
  %900 = vmatpush2.bf16.msra.mxu0 0
  %901 = vmatprep.subr.bf16.mxu0 0
  %902 = vmatpush2.bf16.msra.mxu0 0
  %903 = vmatprep.mubr.bf16.mxu0 0
  %904 = vmatmul.mubr.bf16.gmra.mxu0 %v848
  %v905 = vpop.f32.mrf.mxu0
  %v906 = vadd.f32 %v833, %v905
  %v907 = vpop.f32.mrf.mxu0
  %v908 = vpop.f32.mrf.mxu0
  %v909 = vadd.f32 %v833, %v908
  %v910 = vpop.f32.mrf.mxu0
  %911 = vmatprep.mubr.bf16.mxu0 0
  %912 = vmatmul.mubr.bf16.gmra.mxu0 %v851
  %v913 = vpop.f32.mrf.mxu0
  %v914 = vadd.f32 %v833, %v913
  %v915 = vpop.f32.mrf.mxu0
  %v916 = vpop.f32.mrf.mxu0
  %v917 = vadd.f32 %v833, %v916
  %v918 = vpop.f32.mrf.mxu0
  %919 = vmatprep.mubr.bf16.mxu0 0
  %920 = vmatmul.mubr.bf16.gmra.mxu0 %v854
  %v921 = vpop.f32.mrf.mxu0
  %v922 = vadd.f32 %v833, %v921
  %v923 = vpop.f32.mrf.mxu0
  %v924 = vpop.f32.mrf.mxu0
  %v925 = vadd.f32 %v833, %v924
  %v926 = vpop.f32.mrf.mxu0
  %927 = vmatprep.mubr.bf16.mxu0 0
  %928 = vmatmul.mubr.bf16.gmra.mxu0 %v857
  %v929 = vpop.f32.mrf.mxu0
  %v930 = vadd.f32 %v833, %v929
  %v931 = vpop.f32.mrf.mxu0
  %v932 = vpop.f32.mrf.mxu0
  %v933 = vadd.f32 %v833, %v932
  %v934 = vpop.f32.mrf.mxu0
  %935 = vmatprep.mubr.bf16.mxu0 0
  %936 = vmatmul.mubr.bf16.gmra.mxu0 %v860
  %v937 = vpop.f32.mrf.mxu0
  %v938 = vadd.f32 %v833, %v937
  %v939 = vpop.f32.mrf.mxu0
  %v940 = vpop.f32.mrf.mxu0
  %v941 = vadd.f32 %v833, %v940
  %v942 = vpop.f32.mrf.mxu0
  %943 = vmatprep.mubr.bf16.mxu0 0
  %944 = vmatmul.mubr.bf16.gmra.mxu0 %v863
  %v945 = vpop.f32.mrf.mxu0
  %v946 = vadd.f32 %v833, %v945
  %v947 = vpop.f32.mrf.mxu0
  %v948 = vpop.f32.mrf.mxu0
  %v949 = vadd.f32 %v833, %v948
  %v950 = vpop.f32.mrf.mxu0
  %951 = vmatprep.mubr.bf16.mxu0 0
  %952 = vmatmul.mubr.bf16.gmra.mxu0 %v866
  %v953 = vpop.f32.mrf.mxu0
  %v954 = vadd.f32 %v833, %v953
  %v955 = vpop.f32.mrf.mxu0
  %v956 = vpop.f32.mrf.mxu0
  %v957 = vadd.f32 %v833, %v956
  %v958 = vpop.f32.mrf.mxu0
  %959 = vmatprep.mubr.bf16.mxu0 0
  %960 = vmatmul.mubr.bf16.gmra.mxu0 %v869
  %v961 = vpop.f32.mrf.mxu0
  %v962 = vadd.f32 %v833, %v961
  %v963 = vpop.f32.mrf.mxu0
  %v964 = vpop.f32.mrf.mxu0
  %v965 = vadd.f32 %v833, %v964
  %v966 = vpop.f32.mrf.mxu0
  %967 = vdwg.mxu0
  %v968 = vmax.f32 %v906, 0.0
  %v969 = vmax.f32 %v909, 0.0
  %v970 = vmax.f32 %v914, 0.0
  %v971 = vmax.f32 %v917, 0.0
  %v972 = vmax.f32 %v922, 0.0
  %v973 = vmax.f32 %v925, 0.0
  %v974 = vmax.f32 %v930, 0.0
  %v975 = vmax.f32 %v933, 0.0
  %v976 = vmax.f32 %v938, 0.0
  %v977 = vmax.f32 %v941, 0.0
  %v978 = vmax.f32 %v946, 0.0
  %v979 = vmax.f32 %v949, 0.0
  %v980 = vmax.f32 %v954, 0.0
  %v981 = vmax.f32 %v957, 0.0
  %v982 = vmax.f32 %v962, 0.0
  %v983 = vmax.f32 %v965, 0.0
  %v984 = vpack.c.bf16 %v969, %v968
  %v985 = vpack.c.bf16 %v971, %v970
  %v986 = vpack.c.bf16 %v973, %v972
  %v987 = vpack.c.bf16 %v975, %v974
  %v988 = vpack.c.bf16 %v977, %v976
  %v989 = vpack.c.bf16 %v979, %v978
  %v990 = vpack.c.bf16 %v981, %v980
  %v991 = vpack.c.bf16 %v983, %v982
  %v992 = vld [vmem:[%s9] sm:$0xf]
  %v993 = vld [vmem:[%s9 + $0x4] sm:$0xf]
  %v994 = vld [vmem:[%s9 + $0x8] sm:$0xf]
  %v995 = vld [vmem:[%s9 + $0xc] sm:$0xf]
  %v996 = vld [vmem:[%s9 + $0x10] sm:$0xf]
  %v997 = vld [vmem:[%s9 + $0x14] sm:$0xf]
  %v998 = vld [vmem:[%s9 + $0x18] sm:$0xf]
  %v999 = vld [vmem:[%s9 + $0x1c] sm:$0xf]
  %v1000 = vld [vmem:[%s10] sm:$0x1]
  %v1002 = vlaneseq
  %v1003 = vshrl.u32 %v1002, 7
  %v1004 = vsub.s32 0, %v1003
  %v1005 = vrot.slane %v1000, %v1004
  %v1015 = vunpack.c.l.b16 %v992
  %v1016 = vunpack.c.l.b16 %v993
  %v1017 = vunpack.c.l.b16 %v994
  %v1018 = vunpack.c.l.b16 %v995
  %v1019 = vunpack.c.l.b16 %v996
  %v1020 = vunpack.c.l.b16 %v997
  %v1021 = vunpack.c.l.b16 %v998
  %v1022 = vunpack.c.l.b16 %v999
  %v1023 = vpack.c.b16 %v1016, %v1015
  %v1024 = vpack.c.b16 %v1018, %v1017
  %v1025 = vpack.c.b16 %v1020, %v1019
  %v1026 = vpack.c.b16 %v1022, %v1021
  %vm1031 = vcmask 523264
  %v1033 = vsel %vm1031, %v984, 0
  %v1036 = vsel %vm1031, %v985, 0
  %v1039 = vsel %vm1031, %v986, 0
  %v1042 = vsel %vm1031, %v987, 0
  %v1045 = vsel %vm1031, %v988, 0
  %v1048 = vsel %vm1031, %v989, 0
  %v1051 = vsel %vm1031, %v990, 0
  %v1054 = vsel %vm1031, %v991, 0
  %1056 = vmatprep.subr.bf16.mxu0 0
  %1057 = vmatpush1.bf16.msra.mxu0 0
  %1058 = vmatprep.subr.bf16.mxu0 0
  %1059 = vmatpush1.bf16.msra.mxu0 0
  %1060 = vmatprep.subr.bf16.mxu0 0
  %1061 = vmatpush1.bf16.msra.mxu0 0
  %1062 = vmatprep.subr.bf16.mxu0 0
  %1063 = vmatpush1.bf16.msra.mxu0 0
  %1064 = vmatprep.subr.bf16.mxu0 0
  %1065 = vmatpush1.bf16.msra.mxu0 %v1026
  %1066 = vmatprep.subr.bf16.mxu0 0
  %1067 = vmatpush1.bf16.msra.mxu0 %v1025
  %1068 = vmatprep.subr.bf16.mxu0 0
  %1069 = vmatpush1.bf16.msra.mxu0 %v1024
  %1070 = vmatprep.subr.bf16.mxu0 0
  %1071 = vmatpush1.bf16.msra.mxu0 %v1023
  %1072 = vmatprep.subr.bf16.mxu0 0
  %1073 = vmatpush2.bf16.msra.mxu0 0
  %1074 = vmatprep.subr.bf16.mxu0 0
  %1075 = vmatpush2.bf16.msra.mxu0 0
  %1076 = vmatprep.subr.bf16.mxu0 0
  %1077 = vmatpush2.bf16.msra.mxu0 0
  %1078 = vmatprep.subr.bf16.mxu0 0
  %1079 = vmatpush2.bf16.msra.mxu0 0
  %1080 = vmatprep.subr.bf16.mxu0 0
  %1081 = vmatpush2.bf16.msra.mxu0 0
  %1082 = vmatprep.subr.bf16.mxu0 0
  %1083 = vmatpush2.bf16.msra.mxu0 0
  %1084 = vmatprep.subr.bf16.mxu0 0
  %1085 = vmatpush2.bf16.msra.mxu0 0
  %1086 = vmatprep.subr.bf16.mxu0 0
  %1087 = vmatpush2.bf16.msra.mxu0 0
  %1088 = vmatprep.mubr.bf16.mxu0 0
  %1089 = vmatmul.mubr.bf16.gmra.mxu0 %v1033
  %v1090 = vpop.f32.mrf.mxu0
  %v1091 = vadd.f32 %v1005, %v1090
  %v1092 = vpop.f32.mrf.mxu0
  %v1093 = vpop.f32.mrf.mxu0
  %v1094 = vadd.f32 %v1005, %v1093
  %v1095 = vpop.f32.mrf.mxu0
  %1096 = vmatprep.mubr.bf16.mxu0 0
  %1097 = vmatmul.mubr.bf16.gmra.mxu0 %v1036
  %v1098 = vpop.f32.mrf.mxu0
  %v1099 = vadd.f32 %v1005, %v1098
  %v1100 = vpop.f32.mrf.mxu0
  %v1101 = vpop.f32.mrf.mxu0
  %v1102 = vadd.f32 %v1005, %v1101
  %v1103 = vpop.f32.mrf.mxu0
  %1104 = vmatprep.mubr.bf16.mxu0 0
  %1105 = vmatmul.mubr.bf16.gmra.mxu0 %v1039
  %v1106 = vpop.f32.mrf.mxu0
  %v1107 = vadd.f32 %v1005, %v1106
  %v1108 = vpop.f32.mrf.mxu0
  %v1109 = vpop.f32.mrf.mxu0
  %v1110 = vadd.f32 %v1005, %v1109
  %v1111 = vpop.f32.mrf.mxu0
  %1112 = vmatprep.mubr.bf16.mxu0 0
  %1113 = vmatmul.mubr.bf16.gmra.mxu0 %v1042
  %v1114 = vpop.f32.mrf.mxu0
  %v1115 = vadd.f32 %v1005, %v1114
  %v1116 = vpop.f32.mrf.mxu0
  %v1117 = vpop.f32.mrf.mxu0
  %v1118 = vadd.f32 %v1005, %v1117
  %v1119 = vpop.f32.mrf.mxu0
  %1120 = vmatprep.mubr.bf16.mxu0 0
  %1121 = vmatmul.mubr.bf16.gmra.mxu0 %v1045
  %v1122 = vpop.f32.mrf.mxu0
  %v1123 = vadd.f32 %v1005, %v1122
  %v1124 = vpop.f32.mrf.mxu0
  %v1125 = vpop.f32.mrf.mxu0
  %v1126 = vadd.f32 %v1005, %v1125
  %v1127 = vpop.f32.mrf.mxu0
  %1128 = vmatprep.mubr.bf16.mxu0 0
  %1129 = vmatmul.mubr.bf16.gmra.mxu0 %v1048
  %v1130 = vpop.f32.mrf.mxu0
  %v1131 = vadd.f32 %v1005, %v1130
  %v1132 = vpop.f32.mrf.mxu0
  %v1133 = vpop.f32.mrf.mxu0
  %v1134 = vadd.f32 %v1005, %v1133
  %v1135 = vpop.f32.mrf.mxu0
  %1136 = vmatprep.mubr.bf16.mxu0 0
  %1137 = vmatmul.mubr.bf16.gmra.mxu0 %v1051
  %v1138 = vpop.f32.mrf.mxu0
  %v1139 = vadd.f32 %v1005, %v1138
  %v1140 = vpop.f32.mrf.mxu0
  %v1141 = vpop.f32.mrf.mxu0
  %v1142 = vadd.f32 %v1005, %v1141
  %v1143 = vpop.f32.mrf.mxu0
  %1144 = vmatprep.mubr.bf16.mxu0 0
  %1145 = vmatmul.mubr.bf16.gmra.mxu0 %v1054
  %v1146 = vpop.f32.mrf.mxu0
  %v1147 = vadd.f32 %v1005, %v1146
  %v1148 = vpop.f32.mrf.mxu0
  %v1149 = vpop.f32.mrf.mxu0
  %v1150 = vadd.f32 %v1005, %v1149
  %v1151 = vpop.f32.mrf.mxu0
  %1152 = vdwg.mxu0
  %v1153 = vmax.f32 %v1091, 0.0
  %v1154 = vmax.f32 %v1094, 0.0
  %v1155 = vmax.f32 %v1099, 0.0
  %v1156 = vmax.f32 %v1102, 0.0
  %v1157 = vmax.f32 %v1107, 0.0
  %v1158 = vmax.f32 %v1110, 0.0
  %v1159 = vmax.f32 %v1115, 0.0
  %v1160 = vmax.f32 %v1118, 0.0
  %v1161 = vmax.f32 %v1123, 0.0
  %v1162 = vmax.f32 %v1126, 0.0
  %v1163 = vmax.f32 %v1131, 0.0
  %v1164 = vmax.f32 %v1134, 0.0
  %v1165 = vmax.f32 %v1139, 0.0
  %v1166 = vmax.f32 %v1142, 0.0
  %v1167 = vmax.f32 %v1147, 0.0
  %v1168 = vmax.f32 %v1150, 0.0
  %v1169 = vpack.c.bf16 %v1154, %v1153
  %v1170 = vpack.c.bf16 %v1156, %v1155
  %v1171 = vpack.c.bf16 %v1158, %v1157
  %v1172 = vpack.c.bf16 %v1160, %v1159
  %v1173 = vpack.c.bf16 %v1162, %v1161
  %v1174 = vpack.c.bf16 %v1164, %v1163
  %v1175 = vpack.c.bf16 %v1166, %v1165
  %v1176 = vpack.c.bf16 %v1168, %v1167
  %v1177 = vld [vmem:[%s11] sm:$0xf]
  %v1178 = vld [vmem:[%s11 + $0x4] sm:$0x7]
  %v1179 = vld [vmem:[%s12] sm:$0x1]
  %v1181 = vlaneseq
  %v1182 = vshrl.u32 %v1181, 7
  %v1183 = vsub.s32 0, %v1182
  %v1184 = vrot.slane %v1179, %v1183
  %v1188 = vunpack.c.l.b16 %v1177
  %v1189 = vunpack.c.l.b16 %v1178
  %v1190 = vpack.c.b16 %v1189, %v1188
  %vm1191 = vcmask 113664
  %v1193 = vsel %vm1191, %v1169, 0
  %v1196 = vsel %vm1191, %v1170, 0
  %v1199 = vsel %vm1191, %v1171, 0
  %v1202 = vsel %vm1191, %v1172, 0
  %v1205 = vsel %vm1191, %v1173, 0
  %v1208 = vsel %vm1191, %v1174, 0
  %v1211 = vsel %vm1191, %v1175, 0
  %v1214 = vsel %vm1191, %v1176, 0
  %vm1216 = vcmask 1046528
  %v1218 = vsel %vm1216, %v1190, 0
  %1220 = vmatprep.subr.bf16.mxu0 0
  %1221 = vmatpush1.bf16.msra.mxu0 0
  %1222 = vmatprep.subr.bf16.mxu0 0
  %1223 = vmatpush1.bf16.msra.mxu0 0
  %1224 = vmatprep.subr.bf16.mxu0 0
  %1225 = vmatpush1.bf16.msra.mxu0 0
  %1226 = vmatprep.subr.bf16.mxu0 0
  %1227 = vmatpush1.bf16.msra.mxu0 0
  %1228 = vmatprep.subr.bf16.mxu0 0
  %1229 = vmatpush1.bf16.msra.mxu0 0
  %1230 = vmatprep.subr.bf16.mxu0 0
  %1231 = vmatpush1.bf16.msra.mxu0 0
  %1232 = vmatprep.subr.bf16.mxu0 0
  %1233 = vmatpush1.bf16.msra.mxu0 0
  %1234 = vmatprep.subr.bf16.mxu0 0
  %1235 = vmatpush1.bf16.msra.mxu0 %v1218
  %1236 = vmatprep.subr.bf16.mxu0 0
  %1237 = vmatpush2.bf16.msra.mxu0 0
  %1238 = vmatprep.subr.bf16.mxu0 0
  %1239 = vmatpush2.bf16.msra.mxu0 0
  %1240 = vmatprep.subr.bf16.mxu0 0
  %1241 = vmatpush2.bf16.msra.mxu0 0
  %1242 = vmatprep.subr.bf16.mxu0 0
  %1243 = vmatpush2.bf16.msra.mxu0 0
  %1244 = vmatprep.subr.bf16.mxu0 0
  %1245 = vmatpush2.bf16.msra.mxu0 0
  %1246 = vmatprep.subr.bf16.mxu0 0
  %1247 = vmatpush2.bf16.msra.mxu0 0
  %1248 = vmatprep.subr.bf16.mxu0 0
  %1249 = vmatpush2.bf16.msra.mxu0 0
  %1250 = vmatprep.subr.bf16.mxu0 0
  %1251 = vmatpush2.bf16.msra.mxu0 0
  %1252 = vmatprep.mubr.bf16.mxu0 0
  %1253 = vmatmul.mubr.bf16.gmra.mxu0 %v1193
  %v1254 = vpop.f32.mrf.mxu0
  %v1255 = vadd.f32 %v1184, %v1254
  %v1256 = vpop.f32.mrf.mxu0
  %v1257 = vpop.f32.mrf.mxu0
  %v1258 = vadd.f32 %v1184, %v1257
  %v1259 = vpop.f32.mrf.mxu0
  %1260 = vmatprep.mubr.bf16.mxu0 0
  %1261 = vmatmul.mubr.bf16.gmra.mxu0 %v1196
  %v1262 = vpop.f32.mrf.mxu0
  %v1263 = vadd.f32 %v1184, %v1262
  %v1264 = vpop.f32.mrf.mxu0
  %v1265 = vpop.f32.mrf.mxu0
  %v1266 = vadd.f32 %v1184, %v1265
  %v1267 = vpop.f32.mrf.mxu0
  %1268 = vmatprep.mubr.bf16.mxu0 0
  %1269 = vmatmul.mubr.bf16.gmra.mxu0 %v1199
  %v1270 = vpop.f32.mrf.mxu0
  %v1271 = vadd.f32 %v1184, %v1270
  %v1272 = vpop.f32.mrf.mxu0
  %v1273 = vpop.f32.mrf.mxu0
  %v1274 = vadd.f32 %v1184, %v1273
  %v1275 = vpop.f32.mrf.mxu0
  %1276 = vmatprep.mubr.bf16.mxu0 0
  %1277 = vmatmul.mubr.bf16.gmra.mxu0 %v1202
  %v1278 = vpop.f32.mrf.mxu0
  %v1279 = vadd.f32 %v1184, %v1278
  %v1280 = vpop.f32.mrf.mxu0
  %v1281 = vpop.f32.mrf.mxu0
  %v1282 = vadd.f32 %v1184, %v1281
  %v1283 = vpop.f32.mrf.mxu0
  %1284 = vmatprep.mubr.bf16.mxu0 0
  %1285 = vmatmul.mubr.bf16.gmra.mxu0 %v1205
  %v1286 = vpop.f32.mrf.mxu0
  %v1287 = vadd.f32 %v1184, %v1286
  %v1288 = vpop.f32.mrf.mxu0
  %v1289 = vpop.f32.mrf.mxu0
  %v1290 = vadd.f32 %v1184, %v1289
  %v1291 = vpop.f32.mrf.mxu0
  %1292 = vmatprep.mubr.bf16.mxu0 0
  %1293 = vmatmul.mubr.bf16.gmra.mxu0 %v1208
  %v1294 = vpop.f32.mrf.mxu0
  %v1295 = vadd.f32 %v1184, %v1294
  %v1296 = vpop.f32.mrf.mxu0
  %v1297 = vpop.f32.mrf.mxu0
  %v1298 = vadd.f32 %v1184, %v1297
  %v1299 = vpop.f32.mrf.mxu0
  %1300 = vmatprep.mubr.bf16.mxu0 0
  %1301 = vmatmul.mubr.bf16.gmra.mxu0 %v1211
  %v1302 = vpop.f32.mrf.mxu0
  %v1303 = vadd.f32 %v1184, %v1302
  %v1304 = vpop.f32.mrf.mxu0
  %v1305 = vpop.f32.mrf.mxu0
  %v1306 = vadd.f32 %v1184, %v1305
  %v1307 = vpop.f32.mrf.mxu0
  %1308 = vmatprep.mubr.bf16.mxu0 0
  %1309 = vmatmul.mubr.bf16.gmra.mxu0 %v1214
  %v1310 = vpop.f32.mrf.mxu0
  %v1311 = vadd.f32 %v1184, %v1310
  %v1312 = vpop.f32.mrf.mxu0
  %v1313 = vpop.f32.mrf.mxu0
  %v1314 = vadd.f32 %v1184, %v1313
  %v1315 = vpop.f32.mrf.mxu0
  %1316 = vdwg.mxu0
  %vm1317 = vcmask 15360
  %v1318 = vsel %vm1317, %v1255, -inf
  %1319 = vmax.xlane.f32.xlu0 %v1318
  %v1320 = vpop.xlane.xlu0 %1319
  %v1321 = vsel %vm1317, %v1258, -inf
  %1322 = vmax.xlane.f32.xlu0 %v1321
  %v1323 = vpop.xlane.xlu0 %1322
  %v1324 = vsel %vm1317, %v1263, -inf
  %1325 = vmax.xlane.f32.xlu0 %v1324
  %v1326 = vpop.xlane.xlu0 %1325
  %v1327 = vsel %vm1317, %v1266, -inf
  %1328 = vmax.xlane.f32.xlu0 %v1327
  %v1329 = vpop.xlane.xlu0 %1328
  %v1330 = vsel %vm1317, %v1271, -inf
  %1331 = vmax.xlane.f32.xlu0 %v1330
  %v1332 = vpop.xlane.xlu0 %1331
  %v1333 = vsel %vm1317, %v1274, -inf
  %1334 = vmax.xlane.f32.xlu0 %v1333
  %v1335 = vpop.xlane.xlu0 %1334
  %v1336 = vsel %vm1317, %v1279, -inf
  %1337 = vmax.xlane.f32.xlu0 %v1336
  %v1338 = vpop.xlane.xlu0 %1337
  %v1339 = vsel %vm1317, %v1282, -inf
  %1340 = vmax.xlane.f32.xlu0 %v1339
  %v1341 = vpop.xlane.xlu0 %1340
  %v1342 = vsel %vm1317, %v1287, -inf
  %1343 = vmax.xlane.f32.xlu0 %v1342
  %v1344 = vpop.xlane.xlu0 %1343
  %v1345 = vsel %vm1317, %v1290, -inf
  %1346 = vmax.xlane.f32.xlu0 %v1345
  %v1347 = vpop.xlane.xlu0 %1346
  %v1348 = vsel %vm1317, %v1295, -inf
  %1349 = vmax.xlane.f32.xlu0 %v1348
  %v1350 = vpop.xlane.xlu0 %1349
  %v1351 = vsel %vm1317, %v1298, -inf
  %1352 = vmax.xlane.f32.xlu0 %v1351
  %v1353 = vpop.xlane.xlu0 %1352
  %v1354 = vsel %vm1317, %v1303, -inf
  %1355 = vmax.xlane.f32.xlu0 %v1354
  %v1356 = vpop.xlane.xlu0 %1355
  %v1357 = vsel %vm1317, %v1306, -inf
  %1358 = vmax.xlane.f32.xlu0 %v1357
  %v1359 = vpop.xlane.xlu0 %1358
  %v1360 = vsel %vm1317, %v1311, -inf
  %1361 = vmax.xlane.f32.xlu0 %v1360
  %v1362 = vpop.xlane.xlu0 %1361
  %v1363 = vsel %vm1317, %v1314, -inf
  %1364 = vmax.xlane.f32.xlu0 %v1363
  %v1365 = vpop.xlane.xlu0 %1364
  %v1366 = vsub.f32 %v1255, %v1320
  %v1367 = vsub.f32 %v1258, %v1323
  %v1368 = vsub.f32 %v1263, %v1326
  %v1369 = vsub.f32 %v1266, %v1329
  %v1370 = vsub.f32 %v1271, %v1332
  %v1371 = vsub.f32 %v1274, %v1335
  %v1372 = vsub.f32 %v1279, %v1338
  %v1373 = vsub.f32 %v1282, %v1341
  %v1374 = vsub.f32 %v1287, %v1344
  %v1375 = vsub.f32 %v1290, %v1347
  %v1376 = vsub.f32 %v1295, %v1350
  %v1377 = vsub.f32 %v1298, %v1353
  %v1378 = vsub.f32 %v1303, %v1356
  %v1379 = vsub.f32 %v1306, %v1359
  %v1380 = vsub.f32 %v1311, %v1362
  %v1381 = vsub.f32 %v1314, %v1365
  %v1382 = vmul.f32 %v1366, 1.442695
  %v1383 = vpow.pop %v1382
  %v1384 = vmul.f32 %v1367, 1.442695
  %v1385 = vpow.pop %v1384
  %v1386 = vmul.f32 %v1368, 1.442695
  %v1387 = vpow.pop %v1386
  %v1388 = vmul.f32 %v1369, 1.442695
  %v1389 = vpow.pop %v1388
  %v1390 = vmul.f32 %v1370, 1.442695
  %v1391 = vpow.pop %v1390
  %v1392 = vmul.f32 %v1371, 1.442695
  %v1393 = vpow.pop %v1392
  %v1394 = vmul.f32 %v1372, 1.442695
  %v1395 = vpow.pop %v1394
  %v1396 = vmul.f32 %v1373, 1.442695
  %v1397 = vpow.pop %v1396
  %v1398 = vmul.f32 %v1374, 1.442695
  %v1399 = vpow.pop %v1398
  %v1400 = vmul.f32 %v1375, 1.442695
  %v1401 = vpow.pop %v1400
  %v1402 = vmul.f32 %v1376, 1.442695
  %v1403 = vpow.pop %v1402
  %v1404 = vmul.f32 %v1377, 1.442695
  %v1405 = vpow.pop %v1404
  %v1406 = vmul.f32 %v1378, 1.442695
  %v1407 = vpow.pop %v1406
  %v1408 = vmul.f32 %v1379, 1.442695
  %v1409 = vpow.pop %v1408
  %v1410 = vmul.f32 %v1380, 1.442695
  %v1411 = vpow.pop %v1410
  %v1412 = vmul.f32 %v1381, 1.442695
  %v1413 = vpow.pop %v1412
  %v1414 = vsel %vm1317, %v1383, 0.0
  %1415 = vadd.xlane.f32.xlu0 %v1414
  %v1416 = vpop.xlane.xlu0 %1415
  %v1417 = vsel %vm1317, %v1385, 0.0
  %1418 = vadd.xlane.f32.xlu0 %v1417
  %v1419 = vpop.xlane.xlu0 %1418
  %v1420 = vsel %vm1317, %v1387, 0.0
  %1421 = vadd.xlane.f32.xlu0 %v1420
  %v1422 = vpop.xlane.xlu0 %1421
  %v1423 = vsel %vm1317, %v1389, 0.0
  %1424 = vadd.xlane.f32.xlu0 %v1423
  %v1425 = vpop.xlane.xlu0 %1424
  %v1426 = vsel %vm1317, %v1391, 0.0
  %1427 = vadd.xlane.f32.xlu0 %v1426
  %v1428 = vpop.xlane.xlu0 %1427
  %v1429 = vsel %vm1317, %v1393, 0.0
  %1430 = vadd.xlane.f32.xlu0 %v1429
  %v1431 = vpop.xlane.xlu0 %1430
  %v1432 = vsel %vm1317, %v1395, 0.0
  %1433 = vadd.xlane.f32.xlu0 %v1432
  %v1434 = vpop.xlane.xlu0 %1433
  %v1435 = vsel %vm1317, %v1397, 0.0
  %1436 = vadd.xlane.f32.xlu0 %v1435
  %v1437 = vpop.xlane.xlu0 %1436
  %v1438 = vsel %vm1317, %v1399, 0.0
  %1439 = vadd.xlane.f32.xlu0 %v1438
  %v1440 = vpop.xlane.xlu0 %1439
  %v1441 = vsel %vm1317, %v1401, 0.0
  %1442 = vadd.xlane.f32.xlu0 %v1441
  %v1443 = vpop.xlane.xlu0 %1442
  %v1444 = vsel %vm1317, %v1403, 0.0
  %1445 = vadd.xlane.f32.xlu0 %v1444
  %v1446 = vpop.xlane.xlu0 %1445
  %v1447 = vsel %vm1317, %v1405, 0.0
  %1448 = vadd.xlane.f32.xlu0 %v1447
  %v1449 = vpop.xlane.xlu0 %1448
  %v1450 = vsel %vm1317, %v1407, 0.0
  %1451 = vadd.xlane.f32.xlu0 %v1450
  %v1452 = vpop.xlane.xlu0 %1451
  %v1453 = vsel %vm1317, %v1409, 0.0
  %1454 = vadd.xlane.f32.xlu0 %v1453
  %v1455 = vpop.xlane.xlu0 %1454
  %v1456 = vsel %vm1317, %v1411, 0.0
  %1457 = vadd.xlane.f32.xlu0 %v1456
  %v1458 = vpop.xlane.xlu0 %1457
  %v1459 = vsel %vm1317, %v1413, 0.0
  %1460 = vadd.xlane.f32.xlu0 %v1459
  %v1461 = vpop.xlane.xlu0 %1460
  %v1462 = vlog2.pop %v1416
  %v1463 = vmul.f32 %v1462, 0.6931472
  %v1464 = vlog2.pop %v1419
  %v1465 = vmul.f32 %v1464, 0.6931472
  %v1466 = vlog2.pop %v1422
  %v1467 = vmul.f32 %v1466, 0.6931472
  %v1468 = vlog2.pop %v1425
  %v1469 = vmul.f32 %v1468, 0.6931472
  %v1470 = vlog2.pop %v1428
  %v1471 = vmul.f32 %v1470, 0.6931472
  %v1472 = vlog2.pop %v1431
  %v1473 = vmul.f32 %v1472, 0.6931472
  %v1474 = vlog2.pop %v1434
  %v1475 = vmul.f32 %v1474, 0.6931472
  %v1476 = vlog2.pop %v1437
  %v1477 = vmul.f32 %v1476, 0.6931472
  %v1478 = vlog2.pop %v1440
  %v1479 = vmul.f32 %v1478, 0.6931472
  %v1480 = vlog2.pop %v1443
  %v1481 = vmul.f32 %v1480, 0.6931472
  %v1482 = vlog2.pop %v1446
  %v1483 = vmul.f32 %v1482, 0.6931472
  %v1484 = vlog2.pop %v1449
  %v1485 = vmul.f32 %v1484, 0.6931472
  %v1486 = vlog2.pop %v1452
  %v1487 = vmul.f32 %v1486, 0.6931472
  %v1488 = vlog2.pop %v1455
  %v1489 = vmul.f32 %v1488, 0.6931472
  %v1490 = vlog2.pop %v1458
  %v1491 = vmul.f32 %v1490, 0.6931472
  %v1492 = vlog2.pop %v1461
  %v1493 = vmul.f32 %v1492, 0.6931472
  %v1494 = vadd.f32 %v1320, %v1463
  %v1495 = vadd.f32 %v1323, %v1465
  %v1496 = vadd.f32 %v1326, %v1467
  %v1497 = vadd.f32 %v1329, %v1469
  %v1498 = vadd.f32 %v1332, %v1471
  %v1499 = vadd.f32 %v1335, %v1473
  %v1500 = vadd.f32 %v1338, %v1475
  %v1501 = vadd.f32 %v1341, %v1477
  %v1502 = vadd.f32 %v1344, %v1479
  %v1503 = vadd.f32 %v1347, %v1481
  %v1504 = vadd.f32 %v1350, %v1483
  %v1505 = vadd.f32 %v1353, %v1485
  %v1506 = vadd.f32 %v1356, %v1487
  %v1507 = vadd.f32 %v1359, %v1489
  %v1508 = vadd.f32 %v1362, %v1491
  %v1509 = vadd.f32 %v1365, %v1493
  %v1510 = vsub.f32 %v1255, %v1494
  %v1511 = vsub.f32 %v1258, %v1495
  %v1512 = vsub.f32 %v1263, %v1496
  %v1513 = vsub.f32 %v1266, %v1497
  %v1514 = vsub.f32 %v1271, %v1498
  %v1515 = vsub.f32 %v1274, %v1499
  %v1516 = vsub.f32 %v1279, %v1500
  %v1517 = vsub.f32 %v1282, %v1501
  %v1518 = vsub.f32 %v1287, %v1502
  %v1519 = vsub.f32 %v1290, %v1503
  %v1520 = vsub.f32 %v1295, %v1504
  %v1521 = vsub.f32 %v1298, %v1505
  %v1522 = vsub.f32 %v1303, %v1506
  %v1523 = vsub.f32 %v1306, %v1507
  %v1524 = vsub.f32 %v1311, %v1508
  %v1525 = vsub.f32 %v1314, %v1509
  %1526 = vst.msk [vmem:[%s13] sm:$0xff] %vm1317, %v1510
  %1527 = vst.msk [vmem:[%s13 + $0x8] sm:$0xff] %vm1317, %v1511
  %1528 = vst.msk [vmem:[%s13 + $0x10] sm:$0xff] %vm1317, %v1512
  %1529 = vst.msk [vmem:[%s13 + $0x18] sm:$0xff] %vm1317, %v1513
  %1530 = vst.msk [vmem:[%s13 + $0x20] sm:$0xff] %vm1317, %v1514
  %1531 = vst.msk [vmem:[%s13 + $0x28] sm:$0xff] %vm1317, %v1515
  %1532 = vst.msk [vmem:[%s13 + $0x30] sm:$0xff] %vm1317, %v1516
  %1533 = vst.msk [vmem:[%s13 + $0x38] sm:$0xff] %vm1317, %v1517
  %1534 = vst.msk [vmem:[%s13 + $0x40] sm:$0xff] %vm1317, %v1518
  %1535 = vst.msk [vmem:[%s13 + $0x48] sm:$0xff] %vm1317, %v1519
  %1536 = vst.msk [vmem:[%s13 + $0x50] sm:$0xff] %vm1317, %v1520
  %1537 = vst.msk [vmem:[%s13 + $0x58] sm:$0xff] %vm1317, %v1521
  %1538 = vst.msk [vmem:[%s13 + $0x60] sm:$0xff] %vm1317, %v1522
  %1539 = vst.msk [vmem:[%s13 + $0x68] sm:$0xff] %vm1317, %v1523
  %1540 = vst.msk [vmem:[%s13 + $0x70] sm:$0xff] %vm1317, %v1524
  %1541 = vst.msk [vmem:[%s13 + $0x78] sm:$0xff] %vm1317, %v1525
  // Predicated region
  $region54: #{gcn_forward.3} parent=0 // pred_check
    _
  $region55: #{gcn_forward.3} parent=0 // pred_check_branch
    %1543 = sbr.rel (0) target = $region57
  $region56: #{gcn_forward.3} parent=0 // pred_region
    _
  $region57: #{gcn_forward.3} parent=0 // pred_fallthru
    _
  // Predicated region
  $region58: #{gcn_forward.3} parent=0 // pred_check
    _
  $region59: #{gcn_forward.3} parent=0 // pred_check_branch
    %1545 = sbr.rel (0) target = $region61
  $region60: #{gcn_forward.3} parent=0 // pred_region
    _
  $region61: #{gcn_forward.3} parent=0 // pred_fallthru
    _

</llo_original>
